<compile_context>
chip_gen: v7x
topology: tpu7x:2x2x1
jax: 0.10.0
libtpu: 0.0.40
codegen_flags: <defaults>
</compile_context>

<pallas_src>
import jax
import jax.numpy as jnp
from jax.experimental import pallas as pl
from jax.experimental.pallas import tpu as pltpu

EPS = 1e-5


def resnet_block_kernel(x_ref, w1_ref, w2_ref, g1_ref, bt1_ref, g2_ref,
                        bt2_ref, s_ref, mtop_ref, mbot_ref, out_ref):
    """Shapes (lane-dense, W*Cp == 128):
       x_ref    : (N*H, W*Cp)      activation slab, f32
       w*_ref   : (3, W*Cp, W*Cp)  banded conv weights per kernel row dy, bf16
       g*/bt*   : (1, W*Cp)        BN gamma / beta pre-tiled per lane, f32
       s_ref    : (W*Cp, W*Cp)     channel sum+broadcast matrix / (N*H*W), f32
       mtop_ref : (N*H, 1)         0 where h == 0   (dy=0 halo), else 1
       mbot_ref : (N*H, 1)         0 where h == H-1 (dy=2 halo), else 1
    """
    nh = x_ref.shape[0]
    mtop = mtop_ref[...]
    mbot = mbot_ref[...]

    def conv(x, w_ref):
        # H shifts via sublane rolls (XLU) + boundary masks (VPU); the banded
        # bf16 weights already encode the dx shift, the c_in contraction and
        # the zero padding along W.  Single-expression sum of the three dy
        # partials, f32 accumulation (v7x can keep it in the MRB).
        up = (pltpu.roll(x, 1, 0) * mtop).astype(jnp.bfloat16)       # x[h-1]
        mid = x.astype(jnp.bfloat16)                                  # x[h]
        dn = (pltpu.roll(x, nh - 1, 0) * mbot).astype(jnp.bfloat16)   # x[h+1]
        return (jnp.dot(up, w_ref[0], preferred_element_type=jnp.float32)
                + jnp.dot(mid, w_ref[1], preferred_element_type=jnp.float32)
                + jnp.dot(dn, w_ref[2], preferred_element_type=jnp.float32))

    def bn_relu(y, g_ref, bt_ref):
        # Training-mode BN, biased variance.  One traversal of y for both
        # moments; two M=1 dots against s_ref reduce over the folded W axis
        # and broadcast the per-channel statistic back to every (w, c) lane.
        # Stats / normalization stay in f32.
        ysum = jnp.sum(y, axis=0, keepdims=True)                     # (1, WC)
        ysq = jnp.sum(y * y, axis=0, keepdims=True)                  # (1, WC)
        mean = jnp.dot(ysum, s_ref[...], preferred_element_type=jnp.float32)
        ex2 = jnp.dot(ysq, s_ref[...], preferred_element_type=jnp.float32)
        var = ex2 - mean * mean
        scale = g_ref[...] * jax.lax.rsqrt(var + EPS)                # (1, WC)
        shift = bt_ref[...] - mean * scale
        return jnp.maximum(y * scale + shift, 0.0)

    x = x_ref[...]
    x = bn_relu(x + conv(x, w1_ref), g1_ref, bt1_ref)   # stage 1
    x = bn_relu(x + conv(x, w2_ref), g2_ref, bt2_ref)   # stage 2
    out_ref[...] = x


def _band_weights(w_hwio, width):
    """(3, 3, Cin, Cout) HWIO conv weights -> (3, W*Cin, W*Cout) banded
    matrices B[dy] with
        B[dy][win*Cin + ci, wout*Cout + co] = w[dy, win - wout + 1, ci, co]
    and zero outside the band, so `row @ B[dy]` performs the (dx, ci)
    contraction with zero-padding-along-W semantics built in."""
    _, _, cin, cout = w_hwio.shape
    win = jnp.arange(width)[:, None]
    wout = jnp.arange(width)[None, :]
    ind = jnp.stack([(win == wout + dx - 1) for dx in range(3)]
                    ).astype(w_hwio.dtype)                          # (3, W, W)
    bands = jnp.einsum("ydio,dvw->yviwo", w_hwio, ind)
    return bands.reshape(3, width * cin, width * cout)


@jax.jit
def resnet_block(x_nhwc, w1, b1, g1, bt1, w2, b2, g2, bt2):
    N, H, W, C = x_nhwc.shape
    # Conv biases are per-channel constants added right before training-mode
    # BatchNorm: cancelled exactly by the mean subtraction, so they never
    # enter the kernel.  (Would NOT hold for eval-mode running statistics.)
    del b1, b2

    # Lane-dense layout: pad channels so the lane axis is exactly 128 wide.
    LANES = 128
    assert LANES % W == 0 and LANES // W >= C, "toy-shape layout assumption"
    CP = LANES // W
    WC = W * CP
    NH = N * H

    x_pad = jnp.pad(x_nhwc.astype(jnp.float32),
                    ((0, 0), (0, 0), (0, 0), (0, CP - C)))
    x_slab = x_pad.reshape(NH, WC)

    # Banded conv weights (bf16 MXU operands); zero-padded on both channel
    # axes so dead lanes neither read from nor write to live channels.
    def bands(w):
        wp = jnp.pad(w.astype(jnp.float32),
                     ((0, 0), (0, 0), (0, CP - C), (0, CP - C)))
        return _band_weights(wp, W).astype(jnp.bfloat16)

    band1, band2 = bands(w1), bands(w2)

    # Channel sum + broadcast matrix (f32): reduces over the folded W axis and
    # re-broadcasts; column scale 1/(N*H*W) turns sums into means.
    lane = jnp.arange(WC)
    chan_sum = ((lane[:, None] % CP) == (lane[None, :] % CP)
                ).astype(jnp.float32) / float(N * H * W)

    def tile_param(p):
        return jnp.tile(jnp.pad(p.astype(jnp.float32), (0, CP - C)), W)[None]

    g1_t, bt1_t = tile_param(g1), tile_param(bt1)
    g2_t, bt2_t = tile_param(g2), tile_param(bt2)

    # H-halo masks: zero the rows whose pltpu.roll source crosses a batch / H
    # boundary (SAME zero padding along H).
    rows = jnp.arange(NH)
    mtop = (rows % H != 0).astype(jnp.float32)[:, None]
    mbot = (rows % H != H - 1).astype(jnp.float32)[:, None]

    vmem = pl.BlockSpec(memory_space=pltpu.MemorySpace.VMEM)
    out = pl.pallas_call(
        resnet_block_kernel,
        out_shape=jax.ShapeDtypeStruct((NH, WC), jnp.float32),
        in_specs=[vmem] * 10,
        out_specs=vmem,
    )(x_slab, band1, band2, g1_t, bt1_t, g2_t, bt2_t, chan_sum, mtop, mbot)
    return out.reshape(N, H, W, CP)[..., :C]


def reference(x_nhwc, w1, b1, g1, bt1, w2, b2, g2, bt2,
              conv_dtype=jnp.float32):
    """Plain-JAX reference mirroring the PyTorch forward (training-mode BN).
    conv_dtype=bf16 reproduces the kernel's bf16 MXU-operand rounding."""
    def conv(x, w, b):
        y = jax.lax.conv_general_dilated(
            x.astype(conv_dtype), w.astype(conv_dtype),
            window_strides=(1, 1), padding="SAME",
            dimension_numbers=("NHWC", "HWIO", "NHWC"),
            preferred_element_type=jnp.float32,
            precision=jax.lax.Precision.HIGHEST)
        return y + b

    def bn(x, g, bt):
        mean = x.mean(axis=(0, 1, 2), keepdims=True)
        var = ((x - mean) ** 2).mean(axis=(0, 1, 2), keepdims=True)
        return (x - mean) * jax.lax.rsqrt(var + EPS) * g + bt

    x = jnp.maximum(bn(x_nhwc + conv(x_nhwc, w1, b1), g1, bt1), 0.0)
    x = jnp.maximum(bn(x + conv(x, w2, b2), g2, bt2), 0.0)
    return x


if __name__ == "__main__":
    # Module config: in_features == out_features == 4 (required by residual).
    N, C, H, W = 2, 4, 16, 16

    key = jax.random.PRNGKey(0)
    keys = jax.random.split(key, 9)

    # x in PyTorch NCHW convention, transposed to NHWC for the wrapper.
    x_nchw = jax.random.normal(keys[0], (N, C, H, W), dtype=jnp.float32)
    x_nhwc = jnp.transpose(x_nchw, (0, 2, 3, 1))

    # Conv weights: PyTorch (C_out, C_in, 3, 3) -> HWIO (3, 3, C_in, C_out).
    fan_in = C * 3 * 3
    scale = 1.0 / jnp.sqrt(jnp.float32(fan_in))
    w1 = jax.random.uniform(keys[1], (C, C, 3, 3), jnp.float32, -scale, scale)
    b1 = jax.random.uniform(keys[2], (C,), jnp.float32, -scale, scale)
    w2 = jax.random.uniform(keys[3], (C, C, 3, 3), jnp.float32, -scale, scale)
    b2 = jax.random.uniform(keys[4], (C,), jnp.float32, -scale, scale)
    w1_hwio = jnp.transpose(w1, (2, 3, 1, 0))
    w2_hwio = jnp.transpose(w2, (2, 3, 1, 0))

    # BatchNorm affine params (perturbed so the test is non-trivial).
    g1 = 1.0 + 0.1 * jax.random.normal(keys[5], (C,), jnp.float32)
    bt1 = 0.1 * jax.random.normal(keys[6], (C,), jnp.float32)
    g2 = 1.0 + 0.1 * jax.random.normal(keys[7], (C,), jnp.float32)
    bt2 = 0.1 * jax.random.normal(keys[8], (C,), jnp.float32)

    out = resnet_block(x_nhwc, w1_hwio, b1, g1, bt1, w2_hwio, b2, g2, bt2)
    out = jax.block_until_ready(out)
    assert out.shape == (N, H, W, C)

    # Kernel-math check: reference with conv operands rounded to bf16 (same
    # MXU precision as the kernel), everything else f32.
    ref_bf16 = reference(x_nhwc, w1_hwio, b1, g1, bt1, w2_hwio, b2, g2, bt2,
                         conv_dtype=jnp.bfloat16)
    assert jnp.allclose(out, ref_bf16, atol=5e-3, rtol=5e-3), (
        float(jnp.max(jnp.abs(out - ref_bf16))))

    # End-to-end check against the full-f32 forward; slack covers the bf16
    # MXU-operand rounding applied per the perf review.
    ref_f32 = reference(x_nhwc, w1_hwio, b1, g1, bt1, w2_hwio, b2, g2, bt2)
    assert jnp.allclose(out, ref_f32, atol=2e-2, rtol=2e-2), (
        float(jnp.max(jnp.abs(out - ref_f32))))

    print("KERNEL_OK")
</pallas_src>

<mosaic_0001>
module attributes {stable_mosaic.version = 11 : i64} {
  func.func @resnet_block_kernel(%arg0: memref<32x128xf32, #tpu.memory_space<vmem>>, %arg1: memref<3x128x128xbf16, #tpu.memory_space<vmem>>, %arg2: memref<3x128x128xbf16, #tpu.memory_space<vmem>>, %arg3: memref<1x128xf32, #tpu.memory_space<vmem>>, %arg4: memref<1x128xf32, #tpu.memory_space<vmem>>, %arg5: memref<1x128xf32, #tpu.memory_space<vmem>>, %arg6: memref<1x128xf32, #tpu.memory_space<vmem>>, %arg7: memref<128x128xf32, #tpu.memory_space<vmem>>, %arg8: memref<32x1xf32, #tpu.memory_space<vmem>>, %arg9: memref<32x1xf32, #tpu.memory_space<vmem>>, %arg10: memref<32x128xf32, #tpu.memory_space<vmem>>) attributes {dimension_semantics = [], scalar_prefetch = 0 : i64, scratch_operands = 0 : i64, tpu.core_type = #tpu.core_type<tc>} {
    %c0 = arith.constant 0 : index
    %c0_0 = arith.constant 0 : index
    %0 = vector.load %arg8[%c0, %c0_0] : memref<32x1xf32, #tpu.memory_space<vmem>>, vector<32x1xf32>
    %c0_1 = arith.constant 0 : index
    %c0_2 = arith.constant 0 : index
    %1 = vector.load %arg9[%c0_1, %c0_2] : memref<32x1xf32, #tpu.memory_space<vmem>>, vector<32x1xf32>
    %c0_3 = arith.constant 0 : index
    %c0_4 = arith.constant 0 : index
    %2 = vector.load %arg0[%c0_3, %c0_4] : memref<32x128xf32, #tpu.memory_space<vmem>>, vector<32x128xf32>
    %c1_i32 = arith.constant 1 : i32
    %3 = tpu.dynamic_rotate %2 by %c1_i32 dim 0 : vector<32x128xf32>, i32 -> vector<32x128xf32>
    %4 = vector.broadcast %0 : vector<32x1xf32> to vector<32x128xf32>
    %5 = arith.mulf %3, %4 : vector<32x128xf32>
    %6 = arith.truncf %5 : vector<32x128xf32> to vector<32x128xbf16>
    %7 = arith.truncf %2 : vector<32x128xf32> to vector<32x128xbf16>
    %c31_i32 = arith.constant 31 : i32
    %8 = tpu.dynamic_rotate %2 by %c31_i32 dim 0 : vector<32x128xf32>, i32 -> vector<32x128xf32>
    %9 = vector.broadcast %1 : vector<32x1xf32> to vector<32x128xf32>
    %10 = arith.mulf %8, %9 : vector<32x128xf32>
    %11 = arith.truncf %10 : vector<32x128xf32> to vector<32x128xbf16>
    %c0_5 = arith.constant 0 : index
    %c0_6 = arith.constant 0 : index
    %c0_7 = arith.constant 0 : index
    %12 = vector.load %arg1[%c0_5, %c0_6, %c0_7] : memref<3x128x128xbf16, #tpu.memory_space<vmem>>, vector<1x128x128xbf16>
    %13 = vector.shape_cast %12 : vector<1x128x128xbf16> to vector<128x128xbf16>
    %cst = arith.constant dense<0.000000e+00> : vector<32x128xf32>
    %14 = tpu.matmul %6, %13, %cst {dimension_numbers = #tpu.dot_dimension_numbers<[1], [0], [0], [1], [0, 0, 1, 1], [], []>} : vector<32x128xbf16>, vector<128x128xbf16>, vector<32x128xf32> -> vector<32x128xf32>
    %c1 = arith.constant 1 : index
    %c0_8 = arith.constant 0 : index
    %c0_9 = arith.constant 0 : index
    %15 = vector.load %arg1[%c1, %c0_8, %c0_9] : memref<3x128x128xbf16, #tpu.memory_space<vmem>>, vector<1x128x128xbf16>
    %16 = vector.shape_cast %15 : vector<1x128x128xbf16> to vector<128x128xbf16>
    %cst_10 = arith.constant dense<0.000000e+00> : vector<32x128xf32>
    %17 = tpu.matmul %7, %16, %cst_10 {dimension_numbers = #tpu.dot_dimension_numbers<[1], [0], [0], [1], [0, 0, 1, 1], [], []>} : vector<32x128xbf16>, vector<128x128xbf16>, vector<32x128xf32> -> vector<32x128xf32>
    %18 = arith.addf %14, %17 : vector<32x128xf32>
    %c2 = arith.constant 2 : index
    %c0_11 = arith.constant 0 : index
    %c0_12 = arith.constant 0 : index
    %19 = vector.load %arg1[%c2, %c0_11, %c0_12] : memref<3x128x128xbf16, #tpu.memory_space<vmem>>, vector<1x128x128xbf16>
    %20 = vector.shape_cast %19 : vector<1x128x128xbf16> to vector<128x128xbf16>
    %cst_13 = arith.constant dense<0.000000e+00> : vector<32x128xf32>
    %21 = tpu.matmul %11, %20, %cst_13 {dimension_numbers = #tpu.dot_dimension_numbers<[1], [0], [0], [1], [0, 0, 1, 1], [], []>} : vector<32x128xbf16>, vector<128x128xbf16>, vector<32x128xf32> -> vector<32x128xf32>
    %22 = arith.addf %18, %21 : vector<32x128xf32>
    %23 = arith.addf %2, %22 : vector<32x128xf32>
    %cst_14 = arith.constant dense<0.000000e+00> : vector<128xf32>
    %24 = vector.multi_reduction <add>, %23, %cst_14 [0] : vector<32x128xf32> to vector<128xf32>
    %25 = vector.shape_cast %24 : vector<128xf32> to vector<1x128xf32>
    %26 = arith.mulf %23, %23 : vector<32x128xf32>
    %cst_15 = arith.constant dense<0.000000e+00> : vector<128xf32>
    %27 = vector.multi_reduction <add>, %26, %cst_15 [0] : vector<32x128xf32> to vector<128xf32>
    %28 = vector.shape_cast %27 : vector<128xf32> to vector<1x128xf32>
    %c0_16 = arith.constant 0 : index
    %c0_17 = arith.constant 0 : index
    %29 = vector.load %arg7[%c0_16, %c0_17] : memref<128x128xf32, #tpu.memory_space<vmem>>, vector<128x128xf32>
    %cst_18 = arith.constant dense<0.000000e+00> : vector<1x128xf32>
    %30 = tpu.matmul %25, %29, %cst_18 {dimension_numbers = #tpu.dot_dimension_numbers<[1], [0], [0], [1], [0, 0, 1, 1], [], []>} : vector<1x128xf32>, vector<128x128xf32>, vector<1x128xf32> -> vector<1x128xf32>
    %c0_19 = arith.constant 0 : index
    %c0_20 = arith.constant 0 : index
    %31 = vector.load %arg7[%c0_19, %c0_20] : memref<128x128xf32, #tpu.memory_space<vmem>>, vector<128x128xf32>
    %cst_21 = arith.constant dense<0.000000e+00> : vector<1x128xf32>
    %32 = tpu.matmul %28, %31, %cst_21 {dimension_numbers = #tpu.dot_dimension_numbers<[1], [0], [0], [1], [0, 0, 1, 1], [], []>} : vector<1x128xf32>, vector<128x128xf32>, vector<1x128xf32> -> vector<1x128xf32>
    %33 = arith.mulf %30, %30 : vector<1x128xf32>
    %34 = arith.subf %32, %33 : vector<1x128xf32>
    %c0_22 = arith.constant 0 : index
    %c0_23 = arith.constant 0 : index
    %35 = vector.load %arg3[%c0_22, %c0_23] : memref<1x128xf32, #tpu.memory_space<vmem>>, vector<1x128xf32>
    %cst_24 = arith.constant 9.99999974E-6 : f32
    %36 = vector.broadcast %cst_24 : f32 to vector<1x128xf32>
    %37 = arith.addf %34, %36 : vector<1x128xf32>
    %38 = math.rsqrt %37 : vector<1x128xf32>
    %39 = arith.mulf %35, %38 : vector<1x128xf32>
    %c0_25 = arith.constant 0 : index
    %c0_26 = arith.constant 0 : index
    %40 = vector.load %arg4[%c0_25, %c0_26] : memref<1x128xf32, #tpu.memory_space<vmem>>, vector<1x128xf32>
    %41 = arith.mulf %30, %39 : vector<1x128xf32>
    %42 = arith.subf %40, %41 : vector<1x128xf32>
    %43 = vector.broadcast %39 : vector<1x128xf32> to vector<32x128xf32>
    %44 = arith.mulf %23, %43 : vector<32x128xf32>
    %45 = vector.broadcast %42 : vector<1x128xf32> to vector<32x128xf32>
    %46 = arith.addf %44, %45 : vector<32x128xf32>
    %cst_27 = arith.constant 0.000000e+00 : f32
    %47 = vector.broadcast %cst_27 : f32 to vector<32x128xf32>
    %48 = arith.maximumf %46, %47 : vector<32x128xf32>
    %c1_i32_28 = arith.constant 1 : i32
    %49 = tpu.dynamic_rotate %48 by %c1_i32_28 dim 0 : vector<32x128xf32>, i32 -> vector<32x128xf32>
    %50 = vector.broadcast %0 : vector<32x1xf32> to vector<32x128xf32>
    %51 = arith.mulf %49, %50 : vector<32x128xf32>
    %52 = arith.truncf %51 : vector<32x128xf32> to vector<32x128xbf16>
    %53 = arith.truncf %48 : vector<32x128xf32> to vector<32x128xbf16>
    %c31_i32_29 = arith.constant 31 : i32
    %54 = tpu.dynamic_rotate %48 by %c31_i32_29 dim 0 : vector<32x128xf32>, i32 -> vector<32x128xf32>
    %55 = vector.broadcast %1 : vector<32x1xf32> to vector<32x128xf32>
    %56 = arith.mulf %54, %55 : vector<32x128xf32>
    %57 = arith.truncf %56 : vector<32x128xf32> to vector<32x128xbf16>
    %c0_30 = arith.constant 0 : index
    %c0_31 = arith.constant 0 : index
    %c0_32 = arith.constant 0 : index
    %58 = vector.load %arg2[%c0_30, %c0_31, %c0_32] : memref<3x128x128xbf16, #tpu.memory_space<vmem>>, vector<1x128x128xbf16>
    %59 = vector.shape_cast %58 : vector<1x128x128xbf16> to vector<128x128xbf16>
    %cst_33 = arith.constant dense<0.000000e+00> : vector<32x128xf32>
    %60 = tpu.matmul %52, %59, %cst_33 {dimension_numbers = #tpu.dot_dimension_numbers<[1], [0], [0], [1], [0, 0, 1, 1], [], []>} : vector<32x128xbf16>, vector<128x128xbf16>, vector<32x128xf32> -> vector<32x128xf32>
    %c1_34 = arith.constant 1 : index
    %c0_35 = arith.constant 0 : index
    %c0_36 = arith.constant 0 : index
    %61 = vector.load %arg2[%c1_34, %c0_35, %c0_36] : memref<3x128x128xbf16, #tpu.memory_space<vmem>>, vector<1x128x128xbf16>
    %62 = vector.shape_cast %61 : vector<1x128x128xbf16> to vector<128x128xbf16>
    %cst_37 = arith.constant dense<0.000000e+00> : vector<32x128xf32>
    %63 = tpu.matmul %53, %62, %cst_37 {dimension_numbers = #tpu.dot_dimension_numbers<[1], [0], [0], [1], [0, 0, 1, 1], [], []>} : vector<32x128xbf16>, vector<128x128xbf16>, vector<32x128xf32> -> vector<32x128xf32>
    %64 = arith.addf %60, %63 : vector<32x128xf32>
    %c2_38 = arith.constant 2 : index
    %c0_39 = arith.constant 0 : index
    %c0_40 = arith.constant 0 : index
    %65 = vector.load %arg2[%c2_38, %c0_39, %c0_40] : memref<3x128x128xbf16, #tpu.memory_space<vmem>>, vector<1x128x128xbf16>
    %66 = vector.shape_cast %65 : vector<1x128x128xbf16> to vector<128x128xbf16>
    %cst_41 = arith.constant dense<0.000000e+00> : vector<32x128xf32>
    %67 = tpu.matmul %57, %66, %cst_41 {dimension_numbers = #tpu.dot_dimension_numbers<[1], [0], [0], [1], [0, 0, 1, 1], [], []>} : vector<32x128xbf16>, vector<128x128xbf16>, vector<32x128xf32> -> vector<32x128xf32>
    %68 = arith.addf %64, %67 : vector<32x128xf32>
    %69 = arith.addf %48, %68 : vector<32x128xf32>
    %cst_42 = arith.constant dense<0.000000e+00> : vector<128xf32>
    %70 = vector.multi_reduction <add>, %69, %cst_42 [0] : vector<32x128xf32> to vector<128xf32>
    %71 = vector.shape_cast %70 : vector<128xf32> to vector<1x128xf32>
    %72 = arith.mulf %69, %69 : vector<32x128xf32>
    %cst_43 = arith.constant dense<0.000000e+00> : vector<128xf32>
    %73 = vector.multi_reduction <add>, %72, %cst_43 [0] : vector<32x128xf32> to vector<128xf32>
    %74 = vector.shape_cast %73 : vector<128xf32> to vector<1x128xf32>
    %c0_44 = arith.constant 0 : index
    %c0_45 = arith.constant 0 : index
    %75 = vector.load %arg7[%c0_44, %c0_45] : memref<128x128xf32, #tpu.memory_space<vmem>>, vector<128x128xf32>
    %cst_46 = arith.constant dense<0.000000e+00> : vector<1x128xf32>
    %76 = tpu.matmul %71, %75, %cst_46 {dimension_numbers = #tpu.dot_dimension_numbers<[1], [0], [0], [1], [0, 0, 1, 1], [], []>} : vector<1x128xf32>, vector<128x128xf32>, vector<1x128xf32> -> vector<1x128xf32>
    %c0_47 = arith.constant 0 : index
    %c0_48 = arith.constant 0 : index
    %77 = vector.load %arg7[%c0_47, %c0_48] : memref<128x128xf32, #tpu.memory_space<vmem>>, vector<128x128xf32>
    %cst_49 = arith.constant dense<0.000000e+00> : vector<1x128xf32>
    %78 = tpu.matmul %74, %77, %cst_49 {dimension_numbers = #tpu.dot_dimension_numbers<[1], [0], [0], [1], [0, 0, 1, 1], [], []>} : vector<1x128xf32>, vector<128x128xf32>, vector<1x128xf32> -> vector<1x128xf32>
    %79 = arith.mulf %76, %76 : vector<1x128xf32>
    %80 = arith.subf %78, %79 : vector<1x128xf32>
    %c0_50 = arith.constant 0 : index
    %c0_51 = arith.constant 0 : index
    %81 = vector.load %arg5[%c0_50, %c0_51] : memref<1x128xf32, #tpu.memory_space<vmem>>, vector<1x128xf32>
    %cst_52 = arith.constant 9.99999974E-6 : f32
    %82 = vector.broadcast %cst_52 : f32 to vector<1x128xf32>
    %83 = arith.addf %80, %82 : vector<1x128xf32>
    %84 = math.rsqrt %83 : vector<1x128xf32>
    %85 = arith.mulf %81, %84 : vector<1x128xf32>
    %c0_53 = arith.constant 0 : index
    %c0_54 = arith.constant 0 : index
    %86 = vector.load %arg6[%c0_53, %c0_54] : memref<1x128xf32, #tpu.memory_space<vmem>>, vector<1x128xf32>
    %87 = arith.mulf %76, %85 : vector<1x128xf32>
    %88 = arith.subf %86, %87 : vector<1x128xf32>
    %89 = vector.broadcast %85 : vector<1x128xf32> to vector<32x128xf32>
    %90 = arith.mulf %69, %89 : vector<32x128xf32>
    %91 = vector.broadcast %88 : vector<1x128xf32> to vector<32x128xf32>
    %92 = arith.addf %90, %91 : vector<32x128xf32>
    %cst_55 = arith.constant 0.000000e+00 : f32
    %93 = vector.broadcast %cst_55 : f32 to vector<32x128xf32>
    %94 = arith.maximumf %92, %93 : vector<32x128xf32>
    %c0_56 = arith.constant 0 : index
    %c0_57 = arith.constant 0 : index
    %95 = vector.load %arg10[%c0_56, %c0_57] : memref<32x128xf32, #tpu.memory_space<vmem>>, vector<32x128xf32>
    tpu.vector_store %arg10[%c0_56, %c0_57], %94 {strides = array<i32>} : memref<32x128xf32, #tpu.memory_space<vmem>>, vector<32x128xf32>,
    return
  }
}

</mosaic_0001>

<llo_original>
// kernel: tile.23
$region0: #{tile.23}
  #allocation0 [shape = 's32[1]{0}', space=sflag, size = 0x4, scoped, tag = 'scoped memory for tile.23']
  %s0 = inlined_call_operand.vmem [shape: f32[8], index: 0, kind: input, shape index: {}]
  %s1 = inlined_call_operand.vmem [shape: f32[16,8], index: 1, kind: output, shape index: {}]
  // Predicated region
  $region2: #{tile.23} parent=0 // pred_check
    _
  $region3: #{tile.23} parent=0 // pred_check_branch
    %3 = sbr.rel (0) target = $region5
  $region4: #{tile.23} parent=0 // pred_region
    _
  $region5: #{tile.23} parent=0 // pred_fallthru
    _
  %v4 = vld [vmem:[%s0] ss:$0 sm:$0xff]
  %5 = vst [vmem:[%s1] sm:$0xff] %v4
  %s6 = scalar_lea.vmem %s1, 8
  %7 = vst [vmem:[%s6] sm:$0xff] %v4

// kernel: tile.24
$region0: #{tile.24}
  %s0 = inlined_call_operand.vmem [shape: f32[16,8], index: 0, kind: input, shape index: {}]
  %s1 = inlined_call_operand.vmem [shape: f32[1,128], index: 1, kind: output, shape index: {}]
  $region1: #{tile.24} parent=0
    #allocation0 [shape = 'u8[4096]{0}', space=vmem, size = 0x1000, scoped, tag = 'scoped mem for output reshape']
    %v2 = vld [vmem:[%s0] sm:$0x1]
    %vm3 = vcmask 64512
    %4 = vst.msk [vmem:[#allocation0] sm:$0x1] %vm3, %v2
    %s5 = scalar_lea.vmem %s0, 15
    %v6 = vld [vmem:[%s5] sm:$0x1]
    %7 = vrot.lane.b32.xlu0 %v6, 120
    %v8 = vpop.permute.xlu0 %7
    %vm9 = vcmask 1048512
    %10 = vst.msk [vmem:[#allocation0] sm:$0x1] %vm9, %v8
    %s11 = scalar_lea.vmem %s0, 14
    %v12 = vld [vmem:[%s11] sm:$0x1]
    %13 = vrot.lane.b32.xlu0 %v12, 112
    %v14 = vpop.permute.xlu0 %13
    %vm15 = vcmask 982912
    %16 = vst.msk [vmem:[#allocation0] sm:$0x1] %vm15, %v14
    %s17 = scalar_lea.vmem %s0, 13
    %v18 = vld [vmem:[%s17] sm:$0x1]
    %19 = vrot.lane.b32.xlu0 %v18, 104
    %v20 = vpop.permute.xlu0 %19
    %vm21 = vcmask 917312
    %22 = vst.msk [vmem:[#allocation0] sm:$0x1] %vm21, %v20
    %s23 = scalar_lea.vmem %s0, 12
    %v24 = vld [vmem:[%s23] sm:$0x1]
    %25 = vrot.lane.b32.xlu0 %v24, 96
    %v26 = vpop.permute.xlu0 %25
    %vm27 = vcmask 851712
    %28 = vst.msk [vmem:[#allocation0] sm:$0x1] %vm27, %v26
    %s29 = scalar_lea.vmem %s0, 11
    %v30 = vld [vmem:[%s29] sm:$0x1]
    %31 = vrot.lane.b32.xlu0 %v30, 88
    %v32 = vpop.permute.xlu0 %31
    %vm33 = vcmask 786112
    %34 = vst.msk [vmem:[#allocation0] sm:$0x1] %vm33, %v32
    %s35 = scalar_lea.vmem %s0, 10
    %v36 = vld [vmem:[%s35] sm:$0x1]
    %37 = vrot.lane.b32.xlu0 %v36, 80
    %v38 = vpop.permute.xlu0 %37
    %vm39 = vcmask 720512
    %40 = vst.msk [vmem:[#allocation0] sm:$0x1] %vm39, %v38
    %s41 = scalar_lea.vmem %s0, 9
    %v42 = vld [vmem:[%s41] sm:$0x1]
    %43 = vrot.lane.b32.xlu0 %v42, 72
    %v44 = vpop.permute.xlu0 %43
    %vm45 = vcmask 654912
    %46 = vst.msk [vmem:[#allocation0] sm:$0x1] %vm45, %v44
    %s47 = scalar_lea.vmem %s0, 8
    %v48 = vld [vmem:[%s47] sm:$0x1]
    %49 = vrot.lane.b32.xlu0 %v48, 64
    %v50 = vpop.permute.xlu0 %49
    %vm51 = vcmask 589312
    %52 = vst.msk [vmem:[#allocation0] sm:$0x1] %vm51, %v50
    %s53 = scalar_lea.vmem %s0, 7
    %v54 = vld [vmem:[%s53] sm:$0x1]
    %55 = vrot.lane.b32.xlu0 %v54, 56
    %v56 = vpop.permute.xlu0 %55
    %vm57 = vcmask 523712
    %58 = vst.msk [vmem:[#allocation0] sm:$0x1] %vm57, %v56
    %s59 = scalar_lea.vmem %s0, 6
    %v60 = vld [vmem:[%s59] sm:$0x1]
    %61 = vrot.lane.b32.xlu0 %v60, 48
    %v62 = vpop.permute.xlu0 %61
    %vm63 = vcmask 458112
    %64 = vst.msk [vmem:[#allocation0] sm:$0x1] %vm63, %v62
    %s65 = scalar_lea.vmem %s0, 5
    %v66 = vld [vmem:[%s65] sm:$0x1]
    %67 = vrot.lane.b32.xlu0 %v66, 40
    %v68 = vpop.permute.xlu0 %67
    %vm69 = vcmask 392512
    %70 = vst.msk [vmem:[#allocation0] sm:$0x1] %vm69, %v68
    %s71 = scalar_lea.vmem %s0, 4
    %v72 = vld [vmem:[%s71] sm:$0x1]
    %73 = vrot.lane.b32.xlu0 %v72, 32
    %v74 = vpop.permute.xlu0 %73
    %vm75 = vcmask 326912
    %76 = vst.msk [vmem:[#allocation0] sm:$0x1] %vm75, %v74
    %s77 = scalar_lea.vmem %s0, 3
    %v78 = vld [vmem:[%s77] sm:$0x1]
    %79 = vrot.lane.b32.xlu0 %v78, 24
    %v80 = vpop.permute.xlu0 %79
    %vm81 = vcmask 261312
    %82 = vst.msk [vmem:[#allocation0] sm:$0x1] %vm81, %v80
    %s83 = scalar_lea.vmem %s0, 2
    %v84 = vld [vmem:[%s83] sm:$0x1]
    %85 = vrot.lane.b32.xlu0 %v84, 16
    %v86 = vpop.permute.xlu0 %85
    %vm87 = vcmask 195712
    %88 = vst.msk [vmem:[#allocation0] sm:$0x1] %vm87, %v86
    %s89 = scalar_lea.vmem %s0, 1
    %v90 = vld [vmem:[%s89] sm:$0x1]
    %91 = vrot.lane.b32.xlu0 %v90, 8
    %v92 = vpop.permute.xlu0 %91
    %vm93 = vcmask 130112
    %94 = vst.msk [vmem:[#allocation0] sm:$0x1] %vm93, %v92
    %s96 = sshllo.u32 0, 1
    %v98 = vld [vmem:[#allocation0] sm:%s96]
    %s99 = sshllo.u32 0, 1
    %100 = vst [vmem:[%s1] sm:%s99] %v98

// kernel: resnet_block.1
$region0: #{resnet_block.1}
  #allocation0 [shape = 'u32[]', space=smem, size = 0x4, offset = 0x4, fixed_abs, tag = 'smem constant byte address 0x4 - core index']
  #allocation1 [shape = 'u32[144,128]{1,0:T(1,128)}', space=vmem, size = 0x12000, scoped, tag = 'internal scratch']
  %s0 = inlined_call_operand.vmem [shape: f32[32,128], index: 0, kind: input, shape index: {}]
  %s1 = inlined_call_operand.vmem [shape: bf16[3,128,128], index: 1, kind: input, shape index: {}]
  %s2 = inlined_call_operand.vmem [shape: bf16[3,128,128], index: 2, kind: input, shape index: {}]
  %s3 = inlined_call_operand.vmem [shape: f32[1,128], index: 3, kind: input, shape index: {}]
  %s4 = inlined_call_operand.vmem [shape: f32[1,128], index: 4, kind: input, shape index: {}]
  %s5 = inlined_call_operand.vmem [shape: f32[1,128], index: 5, kind: input, shape index: {}]
  %s6 = inlined_call_operand.vmem [shape: f32[1,128], index: 6, kind: input, shape index: {}]
  %s7 = inlined_call_operand.vmem [shape: f32[128,128], index: 7, kind: input, shape index: {}]
  %s8 = inlined_call_operand.vmem [shape: f32[32,1], index: 8, kind: input, shape index: {}]
  %s9 = inlined_call_operand.vmem [shape: f32[32,1], index: 9, kind: input, shape index: {}]
  %s10 = inlined_call_operand.vmem [shape: f32[32,128], index: 10, kind: output, shape index: {}]
  %s11 = sld [smem:[#allocation0]]
  $region50: #{resnet_block.1} parent=0
    _
  %s13 = ssub.s32 1, %s11
  %s14 = scalar_select 0, %s13, %s11
  // Predicated region
  $region2: #{resnet_block.1} parent=0 // pred_check
    _
  $region3: #{resnet_block.1} parent=0 // pred_check_branch
    %16 = sbr.rel (0) target = $region5
  $region4: #{resnet_block.1} parent=0 // pred_region
    _
  $region5: #{resnet_block.1} parent=0 // pred_fallthru
    _
  // Predicated region
  $region6: #{resnet_block.1} parent=0 // pred_check
    _
  $region7: #{resnet_block.1} parent=0 // pred_check_branch
    %18 = sbr.rel (0) target = $region9
  $region8: #{resnet_block.1} parent=0 // pred_region
    _
  $region9: #{resnet_block.1} parent=0 // pred_fallthru
    _
  // Predicated region
  $region10: #{resnet_block.1} parent=0 // pred_check
    _
  $region11: #{resnet_block.1} parent=0 // pred_check_branch
    %20 = sbr.rel (0) target = $region13
  $region12: #{resnet_block.1} parent=0 // pred_region
    _
  $region13: #{resnet_block.1} parent=0 // pred_fallthru
    _
  // Predicated region
  $region14: #{resnet_block.1} parent=0 // pred_check
    _
  $region15: #{resnet_block.1} parent=0 // pred_check_branch
    %22 = sbr.rel (0) target = $region17
  $region16: #{resnet_block.1} parent=0 // pred_region
    _
  $region17: #{resnet_block.1} parent=0 // pred_fallthru
    _
  // Predicated region
  $region18: #{resnet_block.1} parent=0 // pred_check
    _
  $region19: #{resnet_block.1} parent=0 // pred_check_branch
    %24 = sbr.rel (0) target = $region21
  $region20: #{resnet_block.1} parent=0 // pred_region
    _
  $region21: #{resnet_block.1} parent=0 // pred_fallthru
    _
  // Predicated region
  $region22: #{resnet_block.1} parent=0 // pred_check
    _
  $region23: #{resnet_block.1} parent=0 // pred_check_branch
    %26 = sbr.rel (0) target = $region25
  $region24: #{resnet_block.1} parent=0 // pred_region
    _
  $region25: #{resnet_block.1} parent=0 // pred_fallthru
    _
  // Predicated region
  $region26: #{resnet_block.1} parent=0 // pred_check
    _
  $region27: #{resnet_block.1} parent=0 // pred_check_branch
    %28 = sbr.rel (0) target = $region29
  $region28: #{resnet_block.1} parent=0 // pred_region
    _
  $region29: #{resnet_block.1} parent=0 // pred_fallthru
    _
  // Predicated region
  $region30: #{resnet_block.1} parent=0 // pred_check
    _
  $region31: #{resnet_block.1} parent=0 // pred_check_branch
    %30 = sbr.rel (0) target = $region33
  $region32: #{resnet_block.1} parent=0 // pred_region
    _
  $region33: #{resnet_block.1} parent=0 // pred_fallthru
    _
  // Predicated region
  $region34: #{resnet_block.1} parent=0 // pred_check
    _
  $region35: #{resnet_block.1} parent=0 // pred_check_branch
    %32 = sbr.rel (0) target = $region37
  $region36: #{resnet_block.1} parent=0 // pred_region
    _
  $region37: #{resnet_block.1} parent=0 // pred_fallthru
    _
  // Predicated region
  $region38: #{resnet_block.1} parent=0 // pred_check
    _
  $region39: #{resnet_block.1} parent=0 // pred_check_branch
    %34 = sbr.rel (0) target = $region41
  $region40: #{resnet_block.1} parent=0 // pred_region
    _
  $region41: #{resnet_block.1} parent=0 // pred_fallthru
    _
  %v36 = vld [vmem:[%s8] sm:$0xff]
  %v37 = vld [vmem:[%s8 + $0x8] sm:$0xff]
  %v38 = vld [vmem:[%s8 + $0x10] sm:$0xff]
  %v39 = vld [vmem:[%s8 + $0x18] sm:$0xff]
  %v40 = vld [vmem:[%s9] sm:$0xff]
  %v41 = vld [vmem:[%s9 + $0x8] sm:$0xff]
  %v42 = vld [vmem:[%s9 + $0x10] sm:$0xff]
  %v43 = vld [vmem:[%s9 + $0x18] sm:$0xff]
  %v44 = vld [vmem:[%s0] sm:$0xff]
  %v45 = vld [vmem:[%s0 + $0x8] sm:$0xff]
  %v46 = vld [vmem:[%s0 + $0x10] sm:$0xff]
  %v47 = vld [vmem:[%s0 + $0x18] sm:$0xff]
  %v48 = vrot.slane %v44, 7
  %v49 = vrot.slane %v45, 7
  %v50 = vrot.slane %v46, 7
  %v51 = vrot.slane %v47, 7
  %v52 = vlaneseq
  %v53 = vshrl.u32 %v52, 7
  %vm54 = vcmp.lt.s32.totalorder %v53, 1
  %v55 = vsel %vm54, %v50, %v51
  %v56 = vsel %vm54, %v49, %v50
  %v57 = vsel %vm54, %v48, %v49
  %v58 = vsel %vm54, %v51, %v48
  %60 = vset.pattern.permute.xlu0 0
  %61 = vperm.xlu0 %60, %v36
  %v62 = vpop.permute.xlu0 %61
  %65 = vset.pattern.permute.xlu0 0
  %66 = vperm.xlu0 %65, %v37
  %v67 = vpop.permute.xlu0 %66
  %70 = vset.pattern.permute.xlu0 0
  %71 = vperm.xlu0 %70, %v38
  %v72 = vpop.permute.xlu0 %71
  %75 = vset.pattern.permute.xlu0 0
  %76 = vperm.xlu0 %75, %v39
  %v77 = vpop.permute.xlu0 %76
  %v79 = vmul.f32 %v58, %v62
  %v80 = vmul.f32 %v57, %v67
  %v81 = vmul.f32 %v56, %v72
  %v82 = vmul.f32 %v55, %v77
  %v83 = vpack.c.bf16 %v80, %v79
  %v84 = vpack.c.bf16 %v82, %v81
  %v85 = vpack.c.bf16 %v45, %v44
  %v86 = vpack.c.bf16 %v47, %v46
  %v87 = vrot.slane %v44, 1
  %v88 = vrot.slane %v45, 1
  %v89 = vrot.slane %v46, 1
  %v90 = vrot.slane %v47, 1
  %vm91 = vcmp.lt.s32.totalorder %v53, 7
  %v92 = vsel %vm91, %v89, %v90
  %v93 = vsel %vm91, %v88, %v89
  %v94 = vsel %vm91, %v87, %v88
  %v95 = vsel %vm91, %v90, %v87
  %97 = vset.pattern.permute.xlu0 0
  %98 = vperm.xlu0 %97, %v40
  %v99 = vpop.permute.xlu0 %98
  %102 = vset.pattern.permute.xlu0 0
  %103 = vperm.xlu0 %102, %v41
  %v104 = vpop.permute.xlu0 %103
  %107 = vset.pattern.permute.xlu0 0
  %108 = vperm.xlu0 %107, %v42
  %v109 = vpop.permute.xlu0 %108
  %112 = vset.pattern.permute.xlu0 0
  %113 = vperm.xlu0 %112, %v43
  %v114 = vpop.permute.xlu0 %113
  %v116 = vmul.f32 %v94, %v99
  %v117 = vmul.f32 %v93, %v104
  %v118 = vmul.f32 %v92, %v109
  %v119 = vmul.f32 %v95, %v114
  %v120 = vpack.c.bf16 %v117, %v116
  %v121 = vpack.c.bf16 %v119, %v118
  %v122 = vld [vmem:[%s1] sm:$0xf]
  %v123 = vld [vmem:[%s1 + $0x4] sm:$0xf]
  %v124 = vld [vmem:[%s1 + $0x8] sm:$0xf]
  %v125 = vld [vmem:[%s1 + $0xc] sm:$0xf]
  %v126 = vld [vmem:[%s1 + $0x10] sm:$0xf]
  %v127 = vld [vmem:[%s1 + $0x14] sm:$0xf]
  %v128 = vld [vmem:[%s1 + $0x18] sm:$0xf]
  %v129 = vld [vmem:[%s1 + $0x1c] sm:$0xf]
  %v130 = vld [vmem:[%s1 + $0x20] sm:$0xf]
  %v131 = vld [vmem:[%s1 + $0x24] sm:$0xf]
  %v132 = vld [vmem:[%s1 + $0x28] sm:$0xf]
  %v133 = vld [vmem:[%s1 + $0x2c] sm:$0xf]
  %v134 = vld [vmem:[%s1 + $0x30] sm:$0xf]
  %v135 = vld [vmem:[%s1 + $0x34] sm:$0xf]
  %v136 = vld [vmem:[%s1 + $0x38] sm:$0xf]
  %v137 = vld [vmem:[%s1 + $0x3c] sm:$0xf]
  %s138 = scalar_lea.vmem %s1, 64
  %v139 = vld [vmem:[%s138] sm:$0xf]
  %v140 = vld [vmem:[%s138 + $0x4] sm:$0xf]
  %v141 = vld [vmem:[%s138 + $0x8] sm:$0xf]
  %v142 = vld [vmem:[%s138 + $0xc] sm:$0xf]
  %v143 = vld [vmem:[%s138 + $0x10] sm:$0xf]
  %v144 = vld [vmem:[%s138 + $0x14] sm:$0xf]
  %v145 = vld [vmem:[%s138 + $0x18] sm:$0xf]
  %v146 = vld [vmem:[%s138 + $0x1c] sm:$0xf]
  %v147 = vld [vmem:[%s138 + $0x20] sm:$0xf]
  %v148 = vld [vmem:[%s138 + $0x24] sm:$0xf]
  %v149 = vld [vmem:[%s138 + $0x28] sm:$0xf]
  %v150 = vld [vmem:[%s138 + $0x2c] sm:$0xf]
  %v151 = vld [vmem:[%s138 + $0x30] sm:$0xf]
  %v152 = vld [vmem:[%s138 + $0x34] sm:$0xf]
  %v153 = vld [vmem:[%s138 + $0x38] sm:$0xf]
  %v154 = vld [vmem:[%s138 + $0x3c] sm:$0xf]
  %v171 = vunpack.c.l.b16 %v139
  %v172 = vunpack.c.l.b16 %v140
  %v173 = vunpack.c.l.b16 %v141
  %v174 = vunpack.c.l.b16 %v142
  %v175 = vunpack.c.l.b16 %v143
  %v176 = vunpack.c.l.b16 %v144
  %v177 = vunpack.c.l.b16 %v145
  %v178 = vunpack.c.l.b16 %v146
  %v179 = vunpack.c.l.b16 %v147
  %v180 = vunpack.c.l.b16 %v148
  %v181 = vunpack.c.l.b16 %v149
  %v182 = vunpack.c.l.b16 %v150
  %v183 = vunpack.c.l.b16 %v151
  %v184 = vunpack.c.l.b16 %v152
  %v185 = vunpack.c.l.b16 %v153
  %v186 = vunpack.c.l.b16 %v154
  %v187 = vpack.c.b16 %v172, %v171
  %v188 = vpack.c.b16 %v174, %v173
  %v189 = vpack.c.b16 %v176, %v175
  %v190 = vpack.c.b16 %v178, %v177
  %v191 = vpack.c.b16 %v180, %v179
  %v192 = vpack.c.b16 %v182, %v181
  %v193 = vpack.c.b16 %v184, %v183
  %v194 = vpack.c.b16 %v186, %v185
  %203 = vmatprep.subr.bf16.mxu0 0
  %204 = vmatpush1.bf16.msra.mxu0 %v187
  %205 = vmatprep.subr.bf16.mxu0 0
  %206 = vmatpush1.bf16.msra.mxu0 %v188
  %207 = vmatprep.subr.bf16.mxu0 0
  %208 = vmatpush1.bf16.msra.mxu0 %v189
  %209 = vmatprep.subr.bf16.mxu0 0
  %210 = vmatpush1.bf16.msra.mxu0 %v190
  %211 = vmatprep.subr.bf16.mxu0 0
  %212 = vmatpush1.bf16.msra.mxu0 %v191
  %213 = vmatprep.subr.bf16.mxu0 0
  %214 = vmatpush1.bf16.msra.mxu0 %v192
  %215 = vmatprep.subr.bf16.mxu0 0
  %216 = vmatpush1.bf16.msra.mxu0 %v193
  %217 = vmatprep.subr.bf16.mxu0 0
  %218 = vmatpush1.bf16.msra.mxu0 %v194
  %219 = vmatprep.subr.bf16.mxu0 0
  %220 = vmatpush1.bf16.msra.mxu0 0
  %221 = vmatprep.subr.bf16.mxu0 0
  %222 = vmatpush1.bf16.msra.mxu0 0
  %223 = vmatprep.subr.bf16.mxu0 0
  %224 = vmatpush1.bf16.msra.mxu0 0
  %225 = vmatprep.subr.bf16.mxu0 0
  %226 = vmatpush1.bf16.msra.mxu0 0
  %227 = vmatprep.subr.bf16.mxu0 0
  %228 = vmatpush1.bf16.msra.mxu0 0
  %229 = vmatprep.subr.bf16.mxu0 0
  %230 = vmatpush1.bf16.msra.mxu0 0
  %231 = vmatprep.subr.bf16.mxu0 0
  %232 = vmatpush1.bf16.msra.mxu0 0
  %233 = vmatprep.subr.bf16.mxu0 0
  %234 = vmatpush1.bf16.msra.mxu0 0
  %235 = vmatprep.mubr.bf16.mxu0 0
  %236 = vmatmul.mubr.bf16.gmra.mrb[0].mxu0 %v85
  %v237 = vpop.f32.mrb[0].mxu0
  %v238 = vadd.f32 0.0, %v237
  %v239 = vpop.f32.mrb[0].mxu0
  %v240 = vpop.f32.mrb[0].mxu0
  %v241 = vadd.f32 0.0, %v240
  %v242 = vpop.f32.mrb[0].mxu0
  %243 = vmatprep.mubr.bf16.mxu0 0
  %244 = vmatmul.mubr.bf16.gmra.mrb[0].mxu0 %v86
  %v245 = vpop.f32.mrb[0].mxu0
  %v246 = vadd.f32 0.0, %v245
  %v247 = vpop.f32.mrb[0].mxu0
  %v248 = vpop.f32.mrb[0].mxu0
  %v249 = vadd.f32 0.0, %v248
  %v250 = vpop.f32.mrb[0].mxu0
  %251 = vdwg.mxu0
  %v268 = vunpack.c.l.b16 %v122
  %v269 = vunpack.c.l.b16 %v123
  %v270 = vunpack.c.l.b16 %v124
  %v271 = vunpack.c.l.b16 %v125
  %v272 = vunpack.c.l.b16 %v126
  %v273 = vunpack.c.l.b16 %v127
  %v274 = vunpack.c.l.b16 %v128
  %v275 = vunpack.c.l.b16 %v129
  %v276 = vunpack.c.l.b16 %v130
  %v277 = vunpack.c.l.b16 %v131
  %v278 = vunpack.c.l.b16 %v132
  %v279 = vunpack.c.l.b16 %v133
  %v280 = vunpack.c.l.b16 %v134
  %v281 = vunpack.c.l.b16 %v135
  %v282 = vunpack.c.l.b16 %v136
  %v283 = vunpack.c.l.b16 %v137
  %v284 = vpack.c.b16 %v269, %v268
  %v285 = vpack.c.b16 %v271, %v270
  %v286 = vpack.c.b16 %v273, %v272
  %v287 = vpack.c.b16 %v275, %v274
  %v288 = vpack.c.b16 %v277, %v276
  %v289 = vpack.c.b16 %v279, %v278
  %v290 = vpack.c.b16 %v281, %v280
  %v291 = vpack.c.b16 %v283, %v282
  %300 = vmatprep.subr.bf16.mxu0 0
  %301 = vmatpush1.bf16.msra.mxu0 %v284
  %302 = vmatprep.subr.bf16.mxu0 0
  %303 = vmatpush1.bf16.msra.mxu0 %v285
  %304 = vmatprep.subr.bf16.mxu0 0
  %305 = vmatpush1.bf16.msra.mxu0 %v286
  %306 = vmatprep.subr.bf16.mxu0 0
  %307 = vmatpush1.bf16.msra.mxu0 %v287
  %308 = vmatprep.subr.bf16.mxu0 0
  %309 = vmatpush1.bf16.msra.mxu0 %v288
  %310 = vmatprep.subr.bf16.mxu0 0
  %311 = vmatpush1.bf16.msra.mxu0 %v289
  %312 = vmatprep.subr.bf16.mxu0 0
  %313 = vmatpush1.bf16.msra.mxu0 %v290
  %314 = vmatprep.subr.bf16.mxu0 0
  %315 = vmatpush1.bf16.msra.mxu0 %v291
  %316 = vmatprep.subr.bf16.mxu0 0
  %317 = vmatpush1.bf16.msra.mxu0 0
  %318 = vmatprep.subr.bf16.mxu0 0
  %319 = vmatpush1.bf16.msra.mxu0 0
  %320 = vmatprep.subr.bf16.mxu0 0
  %321 = vmatpush1.bf16.msra.mxu0 0
  %322 = vmatprep.subr.bf16.mxu0 0
  %323 = vmatpush1.bf16.msra.mxu0 0
  %324 = vmatprep.subr.bf16.mxu0 0
  %325 = vmatpush1.bf16.msra.mxu0 0
  %326 = vmatprep.subr.bf16.mxu0 0
  %327 = vmatpush1.bf16.msra.mxu0 0
  %328 = vmatprep.subr.bf16.mxu0 0
  %329 = vmatpush1.bf16.msra.mxu0 0
  %330 = vmatprep.subr.bf16.mxu0 0
  %331 = vmatpush1.bf16.msra.mxu0 0
  %332 = vmatprep.mubr.bf16.mxu0 0
  %333 = vmatmul.mubr.bf16.gmra.mrb[0].mxu0 %v83
  %v334 = vpop.f32.mrb[0].mxu0
  %v335 = vadd.f32 %v238, %v334
  %v336 = vpop.f32.mrb[0].mxu0
  %v337 = vpop.f32.mrb[0].mxu0
  %v338 = vadd.f32 %v241, %v337
  %v339 = vpop.f32.mrb[0].mxu0
  %340 = vmatprep.mubr.bf16.mxu0 0
  %341 = vmatmul.mubr.bf16.gmra.mrb[0].mxu0 %v84
  %v342 = vpop.f32.mrb[0].mxu0
  %v343 = vadd.f32 %v246, %v342
  %v344 = vpop.f32.mrb[0].mxu0
  %v345 = vpop.f32.mrb[0].mxu0
  %v346 = vadd.f32 %v249, %v345
  %v347 = vpop.f32.mrb[0].mxu0
  %348 = vdwg.mxu0
  %s349 = scalar_lea.vmem %s1, 128
  %v350 = vld [vmem:[%s349] sm:$0xf]
  %v351 = vld [vmem:[%s349 + $0x4] sm:$0xf]
  %v352 = vld [vmem:[%s349 + $0x8] sm:$0xf]
  %v353 = vld [vmem:[%s349 + $0xc] sm:$0xf]
  %v354 = vld [vmem:[%s349 + $0x10] sm:$0xf]
  %v355 = vld [vmem:[%s349 + $0x14] sm:$0xf]
  %v356 = vld [vmem:[%s349 + $0x18] sm:$0xf]
  %v357 = vld [vmem:[%s349 + $0x1c] sm:$0xf]
  %v358 = vld [vmem:[%s349 + $0x20] sm:$0xf]
  %v359 = vld [vmem:[%s349 + $0x24] sm:$0xf]
  %v360 = vld [vmem:[%s349 + $0x28] sm:$0xf]
  %v361 = vld [vmem:[%s349 + $0x2c] sm:$0xf]
  %v362 = vld [vmem:[%s349 + $0x30] sm:$0xf]
  %v363 = vld [vmem:[%s349 + $0x34] sm:$0xf]
  %v364 = vld [vmem:[%s349 + $0x38] sm:$0xf]
  %v365 = vld [vmem:[%s349 + $0x3c] sm:$0xf]
  %v382 = vunpack.c.l.b16 %v350
  %v383 = vunpack.c.l.b16 %v351
  %v384 = vunpack.c.l.b16 %v352
  %v385 = vunpack.c.l.b16 %v353
  %v386 = vunpack.c.l.b16 %v354
  %v387 = vunpack.c.l.b16 %v355
  %v388 = vunpack.c.l.b16 %v356
  %v389 = vunpack.c.l.b16 %v357
  %v390 = vunpack.c.l.b16 %v358
  %v391 = vunpack.c.l.b16 %v359
  %v392 = vunpack.c.l.b16 %v360
  %v393 = vunpack.c.l.b16 %v361
  %v394 = vunpack.c.l.b16 %v362
  %v395 = vunpack.c.l.b16 %v363
  %v396 = vunpack.c.l.b16 %v364
  %v397 = vunpack.c.l.b16 %v365
  %v398 = vpack.c.b16 %v383, %v382
  %v399 = vpack.c.b16 %v385, %v384
  %v400 = vpack.c.b16 %v387, %v386
  %v401 = vpack.c.b16 %v389, %v388
  %v402 = vpack.c.b16 %v391, %v390
  %v403 = vpack.c.b16 %v393, %v392
  %v404 = vpack.c.b16 %v395, %v394
  %v405 = vpack.c.b16 %v397, %v396
  %414 = vmatprep.subr.bf16.mxu0 0
  %415 = vmatpush1.bf16.msra.mxu0 %v398
  %416 = vmatprep.subr.bf16.mxu0 0
  %417 = vmatpush1.bf16.msra.mxu0 %v399
  %418 = vmatprep.subr.bf16.mxu0 0
  %419 = vmatpush1.bf16.msra.mxu0 %v400
  %420 = vmatprep.subr.bf16.mxu0 0
  %421 = vmatpush1.bf16.msra.mxu0 %v401
  %422 = vmatprep.subr.bf16.mxu0 0
  %423 = vmatpush1.bf16.msra.mxu0 %v402
  %424 = vmatprep.subr.bf16.mxu0 0
  %425 = vmatpush1.bf16.msra.mxu0 %v403
  %426 = vmatprep.subr.bf16.mxu0 0
  %427 = vmatpush1.bf16.msra.mxu0 %v404
  %428 = vmatprep.subr.bf16.mxu0 0
  %429 = vmatpush1.bf16.msra.mxu0 %v405
  %430 = vmatprep.subr.bf16.mxu0 0
  %431 = vmatpush1.bf16.msra.mxu0 0
  %432 = vmatprep.subr.bf16.mxu0 0
  %433 = vmatpush1.bf16.msra.mxu0 0
  %434 = vmatprep.subr.bf16.mxu0 0
  %435 = vmatpush1.bf16.msra.mxu0 0
  %436 = vmatprep.subr.bf16.mxu0 0
  %437 = vmatpush1.bf16.msra.mxu0 0
  %438 = vmatprep.subr.bf16.mxu0 0
  %439 = vmatpush1.bf16.msra.mxu0 0
  %440 = vmatprep.subr.bf16.mxu0 0
  %441 = vmatpush1.bf16.msra.mxu0 0
  %442 = vmatprep.subr.bf16.mxu0 0
  %443 = vmatpush1.bf16.msra.mxu0 0
  %444 = vmatprep.subr.bf16.mxu0 0
  %445 = vmatpush1.bf16.msra.mxu0 0
  %446 = vmatprep.mubr.bf16.mxu0 0
  %447 = vmatmul.mubr.bf16.gmra.mrb[0].mxu0 %v120
  %v448 = vpop.f32.mrb[0].mxu0
  %v449 = vadd.f32 0.0, %v448
  %v450 = vpop.f32.mrb[0].mxu0
  %v451 = vpop.f32.mrb[0].mxu0
  %v452 = vadd.f32 0.0, %v451
  %v453 = vpop.f32.mrb[0].mxu0
  %454 = vmatprep.mubr.bf16.mxu0 0
  %455 = vmatmul.mubr.bf16.gmra.mrb[0].mxu0 %v121
  %v456 = vpop.f32.mrb[0].mxu0
  %v457 = vadd.f32 0.0, %v456
  %v458 = vpop.f32.mrb[0].mxu0
  %v459 = vpop.f32.mrb[0].mxu0
  %v460 = vadd.f32 0.0, %v459
  %v461 = vpop.f32.mrb[0].mxu0
  %462 = vdwg.mxu0
  %v463 = vadd.f32 %v335, %v449
  %v464 = vadd.f32 %v338, %v452
  %v465 = vadd.f32 %v343, %v457
  %v466 = vadd.f32 %v346, %v460
  %v467 = vadd.f32 %v44, %v463
  %v468 = vadd.f32 %v45, %v464
  %v469 = vadd.f32 %v46, %v465
  %v470 = vadd.f32 %v47, %v466
  %v471 = vadd.f32 %v467, %v468
  %v472 = vadd.f32 %v471, %v469
  %v473 = vadd.f32 %v472, %v470
  %v474 = vrot.slane %v473, 4
  %v475 = vadd.f32 %v473, %v474
  %v476 = vrot.slane %v475, 2
  %v477 = vadd.f32 %v475, %v476
  %v478 = vrot.slane %v477, 1
  %v479 = vadd.f32 %v477, %v478
  %v480 = vmul.f32 %v467, %v467
  %v481 = vmul.f32 %v468, %v468
  %v482 = vmul.f32 %v469, %v469
  %v483 = vmul.f32 %v470, %v470
  %v484 = vadd.f32 %v480, %v481
  %v485 = vadd.f32 %v484, %v482
  %v486 = vadd.f32 %v485, %v483
  %v487 = vrot.slane %v486, 4
  %v488 = vadd.f32 %v486, %v487
  %v489 = vrot.slane %v488, 2
  %v490 = vadd.f32 %v488, %v489
  %v491 = vrot.slane %v490, 1
  %v492 = vadd.f32 %v490, %v491
  %v493 = vld [vmem:[%s7] sm:$0xff]
  %v494 = vld [vmem:[%s7 + $0x8] sm:$0xff]
  %v495 = vld [vmem:[%s7 + $0x10] sm:$0xff]
  %v496 = vld [vmem:[%s7 + $0x18] sm:$0xff]
  %v497 = vld [vmem:[%s7 + $0x20] sm:$0xff]
  %v498 = vld [vmem:[%s7 + $0x28] sm:$0xff]
  %v499 = vld [vmem:[%s7 + $0x30] sm:$0xff]
  %v500 = vld [vmem:[%s7 + $0x38] sm:$0xff]
  %v501 = vld [vmem:[%s7 + $0x40] sm:$0xff]
  %v502 = vld [vmem:[%s7 + $0x48] sm:$0xff]
  %v503 = vld [vmem:[%s7 + $0x50] sm:$0xff]
  %v504 = vld [vmem:[%s7 + $0x58] sm:$0xff]
  %v505 = vld [vmem:[%s7 + $0x60] sm:$0xff]
  %v506 = vld [vmem:[%s7 + $0x68] sm:$0xff]
  %v507 = vld [vmem:[%s7 + $0x70] sm:$0xff]
  %v508 = vld [vmem:[%s7 + $0x78] sm:$0xff]
  %509 = vmatprep.subr.mxu0 0.0
  %510 = vmatpush1.msra.mxu0 %v493
  %511 = vmatprep.subr.mxu0 0.0
  %512 = vmatpush1.msra.mxu0 %v494
  %513 = vmatprep.subr.mxu0 0.0
  %514 = vmatpush1.msra.mxu0 %v495
  %515 = vmatprep.subr.mxu0 0.0
  %516 = vmatpush1.msra.mxu0 %v496
  %517 = vmatprep.subr.mxu0 0.0
  %518 = vmatpush1.msra.mxu0 %v497
  %519 = vmatprep.subr.mxu0 0.0
  %520 = vmatpush1.msra.mxu0 %v498
  %521 = vmatprep.subr.mxu0 0.0
  %522 = vmatpush1.msra.mxu0 %v499
  %523 = vmatprep.subr.mxu0 0.0
  %524 = vmatpush1.msra.mxu0 %v500
  %525 = vmatprep.subr.mxu0 0.0
  %526 = vmatpush1.msra.mxu0 %v501
  %527 = vmatprep.subr.mxu0 0.0
  %528 = vmatpush1.msra.mxu0 %v502
  %529 = vmatprep.subr.mxu0 0.0
  %530 = vmatpush1.msra.mxu0 %v503
  %531 = vmatprep.subr.mxu0 0.0
  %532 = vmatpush1.msra.mxu0 %v504
  %533 = vmatprep.subr.mxu0 0.0
  %534 = vmatpush1.msra.mxu0 %v505
  %535 = vmatprep.subr.mxu0 0.0
  %536 = vmatpush1.msra.mxu0 %v506
  %537 = vmatprep.subr.mxu0 0.0
  %538 = vmatpush1.msra.mxu0 %v507
  %539 = vmatprep.subr.mxu0 0.0
  %540 = vmatpush1.msra.mxu0 %v508
  %541 = vmatprep.subr.mxu0 0.0
  %542 = vmatpush1.msra.mxu0 0.0
  %543 = vmatprep.subr.mxu0 0.0
  %544 = vmatpush1.msra.mxu0 0.0
  %545 = vmatprep.subr.mxu0 0.0
  %546 = vmatpush1.msra.mxu0 0.0
  %547 = vmatprep.subr.mxu0 0.0
  %548 = vmatpush1.msra.mxu0 0.0
  %549 = vmatprep.subr.mxu0 0.0
  %550 = vmatpush1.msra.mxu0 0.0
  %551 = vmatprep.subr.mxu0 0.0
  %552 = vmatpush1.msra.mxu0 0.0
  %553 = vmatprep.subr.mxu0 0.0
  %554 = vmatpush1.msra.mxu0 0.0
  %555 = vmatprep.subr.mxu0 0.0
  %556 = vmatpush1.msra.mxu0 0.0
  %557 = vmatprep.subr.mxu0 0.0
  %558 = vmatpush1.msra.mxu0 0.0
  %559 = vmatprep.subr.mxu0 0.0
  %560 = vmatpush1.msra.mxu0 0.0
  %561 = vmatprep.subr.mxu0 0.0
  %562 = vmatpush1.msra.mxu0 0.0
  %563 = vmatprep.subr.mxu0 0.0
  %564 = vmatpush1.msra.mxu0 0.0
  %565 = vmatprep.subr.mxu0 0.0
  %566 = vmatpush1.msra.mxu0 0.0
  %567 = vmatprep.subr.mxu0 0.0
  %568 = vmatpush1.msra.mxu0 0.0
  %569 = vmatprep.subr.mxu0 0.0
  %570 = vmatpush1.msra.mxu0 0.0
  %571 = vmatprep.subr.mxu0 0.0
  %572 = vmatpush1.msra.mxu0 0.0
  %573 = vmatprep.mubr.f32.mxu0 0.0
  %574 = vmatmul.mubr.f32.gmra.mrb[0].mxu0 %v479
  %v575 = vpop.f32.mrb[0].mxu0
  %v576 = vadd.f32 0.0, %v575
  %v577 = vpop.f32.mrb[0].mxu0
  %578 = vdwg.mxu0
  %579 = vmatprep.subr.mxu0 0.0
  %580 = vmatpush1.msra.mxu0 %v493
  %581 = vmatprep.subr.mxu0 0.0
  %582 = vmatpush1.msra.mxu0 %v494
  %583 = vmatprep.subr.mxu0 0.0
  %584 = vmatpush1.msra.mxu0 %v495
  %585 = vmatprep.subr.mxu0 0.0
  %586 = vmatpush1.msra.mxu0 %v496
  %587 = vmatprep.subr.mxu0 0.0
  %588 = vmatpush1.msra.mxu0 %v497
  %589 = vmatprep.subr.mxu0 0.0
  %590 = vmatpush1.msra.mxu0 %v498
  %591 = vmatprep.subr.mxu0 0.0
  %592 = vmatpush1.msra.mxu0 %v499
  %593 = vmatprep.subr.mxu0 0.0
  %594 = vmatpush1.msra.mxu0 %v500
  %595 = vmatprep.subr.mxu0 0.0
  %596 = vmatpush1.msra.mxu0 %v501
  %597 = vmatprep.subr.mxu0 0.0
  %598 = vmatpush1.msra.mxu0 %v502
  %599 = vmatprep.subr.mxu0 0.0
  %600 = vmatpush1.msra.mxu0 %v503
  %601 = vmatprep.subr.mxu0 0.0
  %602 = vmatpush1.msra.mxu0 %v504
  %603 = vmatprep.subr.mxu0 0.0
  %604 = vmatpush1.msra.mxu0 %v505
  %605 = vmatprep.subr.mxu0 0.0
  %606 = vmatpush1.msra.mxu0 %v506
  %607 = vmatprep.subr.mxu0 0.0
  %608 = vmatpush1.msra.mxu0 %v507
  %609 = vmatprep.subr.mxu0 0.0
  %610 = vmatpush1.msra.mxu0 %v508
  %611 = vmatprep.subr.mxu0 0.0
  %612 = vmatpush1.msra.mxu0 0.0
  %613 = vmatprep.subr.mxu0 0.0
  %614 = vmatpush1.msra.mxu0 0.0
  %615 = vmatprep.subr.mxu0 0.0
  %616 = vmatpush1.msra.mxu0 0.0
  %617 = vmatprep.subr.mxu0 0.0
  %618 = vmatpush1.msra.mxu0 0.0
  %619 = vmatprep.subr.mxu0 0.0
  %620 = vmatpush1.msra.mxu0 0.0
  %621 = vmatprep.subr.mxu0 0.0
  %622 = vmatpush1.msra.mxu0 0.0
  %623 = vmatprep.subr.mxu0 0.0
  %624 = vmatpush1.msra.mxu0 0.0
  %625 = vmatprep.subr.mxu0 0.0
  %626 = vmatpush1.msra.mxu0 0.0
  %627 = vmatprep.subr.mxu0 0.0
  %628 = vmatpush1.msra.mxu0 0.0
  %629 = vmatprep.subr.mxu0 0.0
  %630 = vmatpush1.msra.mxu0 0.0
  %631 = vmatprep.subr.mxu0 0.0
  %632 = vmatpush1.msra.mxu0 0.0
  %633 = vmatprep.subr.mxu0 0.0
  %634 = vmatpush1.msra.mxu0 0.0
  %635 = vmatprep.subr.mxu0 0.0
  %636 = vmatpush1.msra.mxu0 0.0
  %637 = vmatprep.subr.mxu0 0.0
  %638 = vmatpush1.msra.mxu0 0.0
  %639 = vmatprep.subr.mxu0 0.0
  %640 = vmatpush1.msra.mxu0 0.0
  %641 = vmatprep.subr.mxu0 0.0
  %642 = vmatpush1.msra.mxu0 0.0
  %643 = vmatprep.mubr.f32.mxu0 0.0
  %644 = vmatmul.mubr.f32.gmra.mrb[0].mxu0 %v492
  %v645 = vpop.f32.mrb[0].mxu0
  %v646 = vadd.f32 0.0, %v645
  %v647 = vpop.f32.mrb[0].mxu0
  %648 = vdwg.mxu0
  %v649 = vmul.f32 %v576, %v576
  %v650 = vsub.f32 %v646, %v649
  %v651 = vld [vmem:[%s3] sm:$0x1]
  %v652 = vadd.f32 %v650, 1e-05
  %v653 = vrsqrt.pop %v652
  %v654 = vmul.f32 %v651, %v653
  %v655 = vld [vmem:[%s4] sm:$0x1]
  %v656 = vmul.f32 %v576, %v654
  %v657 = vsub.f32 %v655, %v656
  %v659 = vlaneseq
  %v660 = vshrl.u32 %v659, 7
  %v661 = vsub.s32 0, %v660
  %v662 = vrot.slane %v654, %v661
  %v664 = vmul.f32 %v467, %v662
  %v665 = vmul.f32 %v468, %v662
  %v666 = vmul.f32 %v469, %v662
  %v667 = vmul.f32 %v470, %v662
  %v669 = vlaneseq
  %v670 = vshrl.u32 %v669, 7
  %v671 = vsub.s32 0, %v670
  %v672 = vrot.slane %v657, %v671
  %v674 = vadd.f32 %v664, %v672
  %v675 = vadd.f32 %v665, %v672
  %v676 = vadd.f32 %v666, %v672
  %v677 = vadd.f32 %v667, %v672
  %v678 = vmax.f32 %v674, 0.0
  %v679 = vmax.f32 %v675, 0.0
  %v680 = vmax.f32 %v676, 0.0
  %v681 = vmax.f32 %v677, 0.0
  %v682 = vrot.slane %v678, 7
  %v683 = vrot.slane %v679, 7
  %v684 = vrot.slane %v680, 7
  %v685 = vrot.slane %v681, 7
  %v686 = vsel %vm54, %v684, %v685
  %v687 = vsel %vm54, %v683, %v684
  %v688 = vsel %vm54, %v682, %v683
  %v689 = vsel %vm54, %v685, %v682
  %v690 = vmul.f32 %v689, %v62
  %v691 = vmul.f32 %v688, %v67
  %v692 = vmul.f32 %v687, %v72
  %v693 = vmul.f32 %v686, %v77
  %v694 = vpack.c.bf16 %v691, %v690
  %v695 = vpack.c.bf16 %v693, %v692
  %v696 = vpack.c.bf16 %v679, %v678
  %v697 = vpack.c.bf16 %v681, %v680
  %v698 = vrot.slane %v678, 1
  %v699 = vrot.slane %v679, 1
  %v700 = vrot.slane %v680, 1
  %v701 = vrot.slane %v681, 1
  %v702 = vsel %vm91, %v700, %v701
  %v703 = vsel %vm91, %v699, %v700
  %v704 = vsel %vm91, %v698, %v699
  %v705 = vsel %vm91, %v701, %v698
  %v706 = vmul.f32 %v704, %v99
  %v707 = vmul.f32 %v703, %v104
  %v708 = vmul.f32 %v702, %v109
  %v709 = vmul.f32 %v705, %v114
  %v710 = vpack.c.bf16 %v707, %v706
  %v711 = vpack.c.bf16 %v709, %v708
  %v712 = vld [vmem:[%s2] sm:$0xf]
  %v713 = vld [vmem:[%s2 + $0x4] sm:$0xf]
  %v714 = vld [vmem:[%s2 + $0x8] sm:$0xf]
  %v715 = vld [vmem:[%s2 + $0xc] sm:$0xf]
  %v716 = vld [vmem:[%s2 + $0x10] sm:$0xf]
  %v717 = vld [vmem:[%s2 + $0x14] sm:$0xf]
  %v718 = vld [vmem:[%s2 + $0x18] sm:$0xf]
  %v719 = vld [vmem:[%s2 + $0x1c] sm:$0xf]
  %v720 = vld [vmem:[%s2 + $0x20] sm:$0xf]
  %v721 = vld [vmem:[%s2 + $0x24] sm:$0xf]
  %v722 = vld [vmem:[%s2 + $0x28] sm:$0xf]
  %v723 = vld [vmem:[%s2 + $0x2c] sm:$0xf]
  %v724 = vld [vmem:[%s2 + $0x30] sm:$0xf]
  %v725 = vld [vmem:[%s2 + $0x34] sm:$0xf]
  %v726 = vld [vmem:[%s2 + $0x38] sm:$0xf]
  %v727 = vld [vmem:[%s2 + $0x3c] sm:$0xf]
  %s728 = scalar_lea.vmem %s2, 64
  %v729 = vld [vmem:[%s728] sm:$0xf]
  %v730 = vld [vmem:[%s728 + $0x4] sm:$0xf]
  %v731 = vld [vmem:[%s728 + $0x8] sm:$0xf]
  %v732 = vld [vmem:[%s728 + $0xc] sm:$0xf]
  %v733 = vld [vmem:[%s728 + $0x10] sm:$0xf]
  %v734 = vld [vmem:[%s728 + $0x14] sm:$0xf]
  %v735 = vld [vmem:[%s728 + $0x18] sm:$0xf]
  %v736 = vld [vmem:[%s728 + $0x1c] sm:$0xf]
  %v737 = vld [vmem:[%s728 + $0x20] sm:$0xf]
  %v738 = vld [vmem:[%s728 + $0x24] sm:$0xf]
  %v739 = vld [vmem:[%s728 + $0x28] sm:$0xf]
  %v740 = vld [vmem:[%s728 + $0x2c] sm:$0xf]
  %v741 = vld [vmem:[%s728 + $0x30] sm:$0xf]
  %v742 = vld [vmem:[%s728 + $0x34] sm:$0xf]
  %v743 = vld [vmem:[%s728 + $0x38] sm:$0xf]
  %v744 = vld [vmem:[%s728 + $0x3c] sm:$0xf]
  %v761 = vunpack.c.l.b16 %v729
  %v762 = vunpack.c.l.b16 %v730
  %v763 = vunpack.c.l.b16 %v731
  %v764 = vunpack.c.l.b16 %v732
  %v765 = vunpack.c.l.b16 %v733
  %v766 = vunpack.c.l.b16 %v734
  %v767 = vunpack.c.l.b16 %v735
  %v768 = vunpack.c.l.b16 %v736
  %v769 = vunpack.c.l.b16 %v737
  %v770 = vunpack.c.l.b16 %v738
  %v771 = vunpack.c.l.b16 %v739
  %v772 = vunpack.c.l.b16 %v740
  %v773 = vunpack.c.l.b16 %v741
  %v774 = vunpack.c.l.b16 %v742
  %v775 = vunpack.c.l.b16 %v743
  %v776 = vunpack.c.l.b16 %v744
  %v777 = vpack.c.b16 %v762, %v761
  %v778 = vpack.c.b16 %v764, %v763
  %v779 = vpack.c.b16 %v766, %v765
  %v780 = vpack.c.b16 %v768, %v767
  %v781 = vpack.c.b16 %v770, %v769
  %v782 = vpack.c.b16 %v772, %v771
  %v783 = vpack.c.b16 %v774, %v773
  %v784 = vpack.c.b16 %v776, %v775
  %793 = vmatprep.subr.bf16.mxu0 0
  %794 = vmatpush1.bf16.msra.mxu0 %v777
  %795 = vmatprep.subr.bf16.mxu0 0
  %796 = vmatpush1.bf16.msra.mxu0 %v778
  %797 = vmatprep.subr.bf16.mxu0 0
  %798 = vmatpush1.bf16.msra.mxu0 %v779
  %799 = vmatprep.subr.bf16.mxu0 0
  %800 = vmatpush1.bf16.msra.mxu0 %v780
  %801 = vmatprep.subr.bf16.mxu0 0
  %802 = vmatpush1.bf16.msra.mxu0 %v781
  %803 = vmatprep.subr.bf16.mxu0 0
  %804 = vmatpush1.bf16.msra.mxu0 %v782
  %805 = vmatprep.subr.bf16.mxu0 0
  %806 = vmatpush1.bf16.msra.mxu0 %v783
  %807 = vmatprep.subr.bf16.mxu0 0
  %808 = vmatpush1.bf16.msra.mxu0 %v784
  %809 = vmatprep.subr.bf16.mxu0 0
  %810 = vmatpush1.bf16.msra.mxu0 0
  %811 = vmatprep.subr.bf16.mxu0 0
  %812 = vmatpush1.bf16.msra.mxu0 0
  %813 = vmatprep.subr.bf16.mxu0 0
  %814 = vmatpush1.bf16.msra.mxu0 0
  %815 = vmatprep.subr.bf16.mxu0 0
  %816 = vmatpush1.bf16.msra.mxu0 0
  %817 = vmatprep.subr.bf16.mxu0 0
  %818 = vmatpush1.bf16.msra.mxu0 0
  %819 = vmatprep.subr.bf16.mxu0 0
  %820 = vmatpush1.bf16.msra.mxu0 0
  %821 = vmatprep.subr.bf16.mxu0 0
  %822 = vmatpush1.bf16.msra.mxu0 0
  %823 = vmatprep.subr.bf16.mxu0 0
  %824 = vmatpush1.bf16.msra.mxu0 0
  %825 = vmatprep.mubr.bf16.mxu0 0
  %826 = vmatmul.mubr.bf16.gmra.mrb[0].mxu0 %v696
  %v827 = vpop.f32.mrb[0].mxu0
  %v828 = vadd.f32 0.0, %v827
  %v829 = vpop.f32.mrb[0].mxu0
  %v830 = vpop.f32.mrb[0].mxu0
  %v831 = vadd.f32 0.0, %v830
  %v832 = vpop.f32.mrb[0].mxu0
  %833 = vmatprep.mubr.bf16.mxu0 0
  %834 = vmatmul.mubr.bf16.gmra.mrb[0].mxu0 %v697
  %v835 = vpop.f32.mrb[0].mxu0
  %v836 = vadd.f32 0.0, %v835
  %v837 = vpop.f32.mrb[0].mxu0
  %v838 = vpop.f32.mrb[0].mxu0
  %v839 = vadd.f32 0.0, %v838
  %v840 = vpop.f32.mrb[0].mxu0
  %841 = vdwg.mxu0
  %v858 = vunpack.c.l.b16 %v712
  %v859 = vunpack.c.l.b16 %v713
  %v860 = vunpack.c.l.b16 %v714
  %v861 = vunpack.c.l.b16 %v715
  %v862 = vunpack.c.l.b16 %v716
  %v863 = vunpack.c.l.b16 %v717
  %v864 = vunpack.c.l.b16 %v718
  %v865 = vunpack.c.l.b16 %v719
  %v866 = vunpack.c.l.b16 %v720
  %v867 = vunpack.c.l.b16 %v721
  %v868 = vunpack.c.l.b16 %v722
  %v869 = vunpack.c.l.b16 %v723
  %v870 = vunpack.c.l.b16 %v724
  %v871 = vunpack.c.l.b16 %v725
  %v872 = vunpack.c.l.b16 %v726
  %v873 = vunpack.c.l.b16 %v727
  %v874 = vpack.c.b16 %v859, %v858
  %v875 = vpack.c.b16 %v861, %v860
  %v876 = vpack.c.b16 %v863, %v862
  %v877 = vpack.c.b16 %v865, %v864
  %v878 = vpack.c.b16 %v867, %v866
  %v879 = vpack.c.b16 %v869, %v868
  %v880 = vpack.c.b16 %v871, %v870
  %v881 = vpack.c.b16 %v873, %v872
  %890 = vmatprep.subr.bf16.mxu0 0
  %891 = vmatpush1.bf16.msra.mxu0 %v874
  %892 = vmatprep.subr.bf16.mxu0 0
  %893 = vmatpush1.bf16.msra.mxu0 %v875
  %894 = vmatprep.subr.bf16.mxu0 0
  %895 = vmatpush1.bf16.msra.mxu0 %v876
  %896 = vmatprep.subr.bf16.mxu0 0
  %897 = vmatpush1.bf16.msra.mxu0 %v877
  %898 = vmatprep.subr.bf16.mxu0 0
  %899 = vmatpush1.bf16.msra.mxu0 %v878
  %900 = vmatprep.subr.bf16.mxu0 0
  %901 = vmatpush1.bf16.msra.mxu0 %v879
  %902 = vmatprep.subr.bf16.mxu0 0
  %903 = vmatpush1.bf16.msra.mxu0 %v880
  %904 = vmatprep.subr.bf16.mxu0 0
  %905 = vmatpush1.bf16.msra.mxu0 %v881
  %906 = vmatprep.subr.bf16.mxu0 0
  %907 = vmatpush1.bf16.msra.mxu0 0
  %908 = vmatprep.subr.bf16.mxu0 0
  %909 = vmatpush1.bf16.msra.mxu0 0
  %910 = vmatprep.subr.bf16.mxu0 0
  %911 = vmatpush1.bf16.msra.mxu0 0
  %912 = vmatprep.subr.bf16.mxu0 0
  %913 = vmatpush1.bf16.msra.mxu0 0
  %914 = vmatprep.subr.bf16.mxu0 0
  %915 = vmatpush1.bf16.msra.mxu0 0
  %916 = vmatprep.subr.bf16.mxu0 0
  %917 = vmatpush1.bf16.msra.mxu0 0
  %918 = vmatprep.subr.bf16.mxu0 0
  %919 = vmatpush1.bf16.msra.mxu0 0
  %920 = vmatprep.subr.bf16.mxu0 0
  %921 = vmatpush1.bf16.msra.mxu0 0
  %922 = vmatprep.mubr.bf16.mxu0 0
  %923 = vmatmul.mubr.bf16.gmra.mrb[0].mxu0 %v694
  %v924 = vpop.f32.mrb[0].mxu0
  %v925 = vadd.f32 %v828, %v924
  %v926 = vpop.f32.mrb[0].mxu0
  %v927 = vpop.f32.mrb[0].mxu0
  %v928 = vadd.f32 %v831, %v927
  %v929 = vpop.f32.mrb[0].mxu0
  %930 = vmatprep.mubr.bf16.mxu0 0
  %931 = vmatmul.mubr.bf16.gmra.mrb[0].mxu0 %v695
  %v932 = vpop.f32.mrb[0].mxu0
  %v933 = vadd.f32 %v836, %v932
  %v934 = vpop.f32.mrb[0].mxu0
  %v935 = vpop.f32.mrb[0].mxu0
  %v936 = vadd.f32 %v839, %v935
  %v937 = vpop.f32.mrb[0].mxu0
  %938 = vdwg.mxu0
  %s939 = scalar_lea.vmem %s2, 128
  %v940 = vld [vmem:[%s939] sm:$0xf]
  %v941 = vld [vmem:[%s939 + $0x4] sm:$0xf]
  %v942 = vld [vmem:[%s939 + $0x8] sm:$0xf]
  %v943 = vld [vmem:[%s939 + $0xc] sm:$0xf]
  %v944 = vld [vmem:[%s939 + $0x10] sm:$0xf]
  %v945 = vld [vmem:[%s939 + $0x14] sm:$0xf]
  %v946 = vld [vmem:[%s939 + $0x18] sm:$0xf]
  %v947 = vld [vmem:[%s939 + $0x1c] sm:$0xf]
  %v948 = vld [vmem:[%s939 + $0x20] sm:$0xf]
  %v949 = vld [vmem:[%s939 + $0x24] sm:$0xf]
  %v950 = vld [vmem:[%s939 + $0x28] sm:$0xf]
  %v951 = vld [vmem:[%s939 + $0x2c] sm:$0xf]
  %v952 = vld [vmem:[%s939 + $0x30] sm:$0xf]
  %v953 = vld [vmem:[%s939 + $0x34] sm:$0xf]
  %v954 = vld [vmem:[%s939 + $0x38] sm:$0xf]
  %v955 = vld [vmem:[%s939 + $0x3c] sm:$0xf]
  %v972 = vunpack.c.l.b16 %v940
  %v973 = vunpack.c.l.b16 %v941
  %v974 = vunpack.c.l.b16 %v942
  %v975 = vunpack.c.l.b16 %v943
  %v976 = vunpack.c.l.b16 %v944
  %v977 = vunpack.c.l.b16 %v945
  %v978 = vunpack.c.l.b16 %v946
  %v979 = vunpack.c.l.b16 %v947
  %v980 = vunpack.c.l.b16 %v948
  %v981 = vunpack.c.l.b16 %v949
  %v982 = vunpack.c.l.b16 %v950
  %v983 = vunpack.c.l.b16 %v951
  %v984 = vunpack.c.l.b16 %v952
  %v985 = vunpack.c.l.b16 %v953
  %v986 = vunpack.c.l.b16 %v954
  %v987 = vunpack.c.l.b16 %v955
  %v988 = vpack.c.b16 %v973, %v972
  %v989 = vpack.c.b16 %v975, %v974
  %v990 = vpack.c.b16 %v977, %v976
  %v991 = vpack.c.b16 %v979, %v978
  %v992 = vpack.c.b16 %v981, %v980
  %v993 = vpack.c.b16 %v983, %v982
  %v994 = vpack.c.b16 %v985, %v984
  %v995 = vpack.c.b16 %v987, %v986
  %1004 = vmatprep.subr.bf16.mxu0 0
  %1005 = vmatpush1.bf16.msra.mxu0 %v988
  %1006 = vmatprep.subr.bf16.mxu0 0
  %1007 = vmatpush1.bf16.msra.mxu0 %v989
  %1008 = vmatprep.subr.bf16.mxu0 0
  %1009 = vmatpush1.bf16.msra.mxu0 %v990
  %1010 = vmatprep.subr.bf16.mxu0 0
  %1011 = vmatpush1.bf16.msra.mxu0 %v991
  %1012 = vmatprep.subr.bf16.mxu0 0
  %1013 = vmatpush1.bf16.msra.mxu0 %v992
  %1014 = vmatprep.subr.bf16.mxu0 0
  %1015 = vmatpush1.bf16.msra.mxu0 %v993
  %1016 = vmatprep.subr.bf16.mxu0 0
  %1017 = vmatpush1.bf16.msra.mxu0 %v994
  %1018 = vmatprep.subr.bf16.mxu0 0
  %1019 = vmatpush1.bf16.msra.mxu0 %v995
  %1020 = vmatprep.subr.bf16.mxu0 0
  %1021 = vmatpush1.bf16.msra.mxu0 0
  %1022 = vmatprep.subr.bf16.mxu0 0
  %1023 = vmatpush1.bf16.msra.mxu0 0
  %1024 = vmatprep.subr.bf16.mxu0 0
  %1025 = vmatpush1.bf16.msra.mxu0 0
  %1026 = vmatprep.subr.bf16.mxu0 0
  %1027 = vmatpush1.bf16.msra.mxu0 0
  %1028 = vmatprep.subr.bf16.mxu0 0
  %1029 = vmatpush1.bf16.msra.mxu0 0
  %1030 = vmatprep.subr.bf16.mxu0 0
  %1031 = vmatpush1.bf16.msra.mxu0 0
  %1032 = vmatprep.subr.bf16.mxu0 0
  %1033 = vmatpush1.bf16.msra.mxu0 0
  %1034 = vmatprep.subr.bf16.mxu0 0
  %1035 = vmatpush1.bf16.msra.mxu0 0
  %1036 = vmatprep.mubr.bf16.mxu0 0
  %1037 = vmatmul.mubr.bf16.gmra.mrb[0].mxu0 %v710
  %v1038 = vpop.f32.mrb[0].mxu0
  %v1039 = vadd.f32 0.0, %v1038
  %v1040 = vpop.f32.mrb[0].mxu0
  %v1041 = vpop.f32.mrb[0].mxu0
  %v1042 = vadd.f32 0.0, %v1041
  %v1043 = vpop.f32.mrb[0].mxu0
  %1044 = vmatprep.mubr.bf16.mxu0 0
  %1045 = vmatmul.mubr.bf16.gmra.mrb[0].mxu0 %v711
  %v1046 = vpop.f32.mrb[0].mxu0
  %v1047 = vadd.f32 0.0, %v1046
  %v1048 = vpop.f32.mrb[0].mxu0
  %v1049 = vpop.f32.mrb[0].mxu0
  %v1050 = vadd.f32 0.0, %v1049
  %v1051 = vpop.f32.mrb[0].mxu0
  %1052 = vdwg.mxu0
  %v1053 = vadd.f32 %v925, %v1039
  %v1054 = vadd.f32 %v928, %v1042
  %v1055 = vadd.f32 %v933, %v1047
  %v1056 = vadd.f32 %v936, %v1050
  %v1057 = vadd.f32 %v678, %v1053
  %v1058 = vadd.f32 %v679, %v1054
  %v1059 = vadd.f32 %v680, %v1055
  %v1060 = vadd.f32 %v681, %v1056
  %v1061 = vadd.f32 %v1057, %v1058
  %v1062 = vadd.f32 %v1061, %v1059
  %v1063 = vadd.f32 %v1062, %v1060
  %v1064 = vrot.slane %v1063, 4
  %v1065 = vadd.f32 %v1063, %v1064
  %v1066 = vrot.slane %v1065, 2
  %v1067 = vadd.f32 %v1065, %v1066
  %v1068 = vrot.slane %v1067, 1
  %v1069 = vadd.f32 %v1067, %v1068
  %v1070 = vmul.f32 %v1057, %v1057
  %v1071 = vmul.f32 %v1058, %v1058
  %v1072 = vmul.f32 %v1059, %v1059
  %v1073 = vmul.f32 %v1060, %v1060
  %v1074 = vadd.f32 %v1070, %v1071
  %v1075 = vadd.f32 %v1074, %v1072
  %v1076 = vadd.f32 %v1075, %v1073
  %v1077 = vrot.slane %v1076, 4
  %v1078 = vadd.f32 %v1076, %v1077
  %v1079 = vrot.slane %v1078, 2
  %v1080 = vadd.f32 %v1078, %v1079
  %v1081 = vrot.slane %v1080, 1
  %v1082 = vadd.f32 %v1080, %v1081
  %1083 = vmatprep.subr.mxu0 0.0
  %1084 = vmatpush1.msra.mxu0 %v493
  %1085 = vmatprep.subr.mxu0 0.0
  %1086 = vmatpush1.msra.mxu0 %v494
  %1087 = vmatprep.subr.mxu0 0.0
  %1088 = vmatpush1.msra.mxu0 %v495
  %1089 = vmatprep.subr.mxu0 0.0
  %1090 = vmatpush1.msra.mxu0 %v496
  %1091 = vmatprep.subr.mxu0 0.0
  %1092 = vmatpush1.msra.mxu0 %v497
  %1093 = vmatprep.subr.mxu0 0.0
  %1094 = vmatpush1.msra.mxu0 %v498
  %1095 = vmatprep.subr.mxu0 0.0
  %1096 = vmatpush1.msra.mxu0 %v499
  %1097 = vmatprep.subr.mxu0 0.0
  %1098 = vmatpush1.msra.mxu0 %v500
  %1099 = vmatprep.subr.mxu0 0.0
  %1100 = vmatpush1.msra.mxu0 %v501
  %1101 = vmatprep.subr.mxu0 0.0
  %1102 = vmatpush1.msra.mxu0 %v502
  %1103 = vmatprep.subr.mxu0 0.0
  %1104 = vmatpush1.msra.mxu0 %v503
  %1105 = vmatprep.subr.mxu0 0.0
  %1106 = vmatpush1.msra.mxu0 %v504
  %1107 = vmatprep.subr.mxu0 0.0
  %1108 = vmatpush1.msra.mxu0 %v505
  %1109 = vmatprep.subr.mxu0 0.0
  %1110 = vmatpush1.msra.mxu0 %v506
  %1111 = vmatprep.subr.mxu0 0.0
  %1112 = vmatpush1.msra.mxu0 %v507
  %1113 = vmatprep.subr.mxu0 0.0
  %1114 = vmatpush1.msra.mxu0 %v508
  %1115 = vmatprep.subr.mxu0 0.0
  %1116 = vmatpush1.msra.mxu0 0.0
  %1117 = vmatprep.subr.mxu0 0.0
  %1118 = vmatpush1.msra.mxu0 0.0
  %1119 = vmatprep.subr.mxu0 0.0
  %1120 = vmatpush1.msra.mxu0 0.0
  %1121 = vmatprep.subr.mxu0 0.0
  %1122 = vmatpush1.msra.mxu0 0.0
  %1123 = vmatprep.subr.mxu0 0.0
  %1124 = vmatpush1.msra.mxu0 0.0
  %1125 = vmatprep.subr.mxu0 0.0
  %1126 = vmatpush1.msra.mxu0 0.0
  %1127 = vmatprep.subr.mxu0 0.0
  %1128 = vmatpush1.msra.mxu0 0.0
  %1129 = vmatprep.subr.mxu0 0.0
  %1130 = vmatpush1.msra.mxu0 0.0
  %1131 = vmatprep.subr.mxu0 0.0
  %1132 = vmatpush1.msra.mxu0 0.0
  %1133 = vmatprep.subr.mxu0 0.0
  %1134 = vmatpush1.msra.mxu0 0.0
  %1135 = vmatprep.subr.mxu0 0.0
  %1136 = vmatpush1.msra.mxu0 0.0
  %1137 = vmatprep.subr.mxu0 0.0
  %1138 = vmatpush1.msra.mxu0 0.0
  %1139 = vmatprep.subr.mxu0 0.0
  %1140 = vmatpush1.msra.mxu0 0.0
  %1141 = vmatprep.subr.mxu0 0.0
  %1142 = vmatpush1.msra.mxu0 0.0
  %1143 = vmatprep.subr.mxu0 0.0
  %1144 = vmatpush1.msra.mxu0 0.0
  %1145 = vmatprep.subr.mxu0 0.0
  %1146 = vmatpush1.msra.mxu0 0.0
  %1147 = vmatprep.mubr.f32.mxu0 0.0
  %1148 = vmatmul.mubr.f32.gmra.mrb[0].mxu0 %v1069
  %v1149 = vpop.f32.mrb[0].mxu0
  %v1150 = vadd.f32 0.0, %v1149
  %v1151 = vpop.f32.mrb[0].mxu0
  %1152 = vdwg.mxu0
  %1153 = vmatprep.subr.mxu0 0.0
  %1154 = vmatpush1.msra.mxu0 %v493
  %1155 = vmatprep.subr.mxu0 0.0
  %1156 = vmatpush1.msra.mxu0 %v494
  %1157 = vmatprep.subr.mxu0 0.0
  %1158 = vmatpush1.msra.mxu0 %v495
  %1159 = vmatprep.subr.mxu0 0.0
  %1160 = vmatpush1.msra.mxu0 %v496
  %1161 = vmatprep.subr.mxu0 0.0
  %1162 = vmatpush1.msra.mxu0 %v497
  %1163 = vmatprep.subr.mxu0 0.0
  %1164 = vmatpush1.msra.mxu0 %v498
  %1165 = vmatprep.subr.mxu0 0.0
  %1166 = vmatpush1.msra.mxu0 %v499
  %1167 = vmatprep.subr.mxu0 0.0
  %1168 = vmatpush1.msra.mxu0 %v500
  %1169 = vmatprep.subr.mxu0 0.0
  %1170 = vmatpush1.msra.mxu0 %v501
  %1171 = vmatprep.subr.mxu0 0.0
  %1172 = vmatpush1.msra.mxu0 %v502
  %1173 = vmatprep.subr.mxu0 0.0
  %1174 = vmatpush1.msra.mxu0 %v503
  %1175 = vmatprep.subr.mxu0 0.0
  %1176 = vmatpush1.msra.mxu0 %v504
  %1177 = vmatprep.subr.mxu0 0.0
  %1178 = vmatpush1.msra.mxu0 %v505
  %1179 = vmatprep.subr.mxu0 0.0
  %1180 = vmatpush1.msra.mxu0 %v506
  %1181 = vmatprep.subr.mxu0 0.0
  %1182 = vmatpush1.msra.mxu0 %v507
  %1183 = vmatprep.subr.mxu0 0.0
  %1184 = vmatpush1.msra.mxu0 %v508
  %1185 = vmatprep.subr.mxu0 0.0
  %1186 = vmatpush1.msra.mxu0 0.0
  %1187 = vmatprep.subr.mxu0 0.0
  %1188 = vmatpush1.msra.mxu0 0.0
  %1189 = vmatprep.subr.mxu0 0.0
  %1190 = vmatpush1.msra.mxu0 0.0
  %1191 = vmatprep.subr.mxu0 0.0
  %1192 = vmatpush1.msra.mxu0 0.0
  %1193 = vmatprep.subr.mxu0 0.0
  %1194 = vmatpush1.msra.mxu0 0.0
  %1195 = vmatprep.subr.mxu0 0.0
  %1196 = vmatpush1.msra.mxu0 0.0
  %1197 = vmatprep.subr.mxu0 0.0
  %1198 = vmatpush1.msra.mxu0 0.0
  %1199 = vmatprep.subr.mxu0 0.0
  %1200 = vmatpush1.msra.mxu0 0.0
  %1201 = vmatprep.subr.mxu0 0.0
  %1202 = vmatpush1.msra.mxu0 0.0
  %1203 = vmatprep.subr.mxu0 0.0
  %1204 = vmatpush1.msra.mxu0 0.0
  %1205 = vmatprep.subr.mxu0 0.0
  %1206 = vmatpush1.msra.mxu0 0.0
  %1207 = vmatprep.subr.mxu0 0.0
  %1208 = vmatpush1.msra.mxu0 0.0
  %1209 = vmatprep.subr.mxu0 0.0
  %1210 = vmatpush1.msra.mxu0 0.0
  %1211 = vmatprep.subr.mxu0 0.0
  %1212 = vmatpush1.msra.mxu0 0.0
  %1213 = vmatprep.subr.mxu0 0.0
  %1214 = vmatpush1.msra.mxu0 0.0
  %1215 = vmatprep.subr.mxu0 0.0
  %1216 = vmatpush1.msra.mxu0 0.0
  %1217 = vmatprep.mubr.f32.mxu0 0.0
  %1218 = vmatmul.mubr.f32.gmra.mrb[0].mxu0 %v1082
  %v1219 = vpop.f32.mrb[0].mxu0
  %v1220 = vadd.f32 0.0, %v1219
  %v1221 = vpop.f32.mrb[0].mxu0
  %1222 = vdwg.mxu0
  %v1223 = vmul.f32 %v1150, %v1150
  %v1224 = vsub.f32 %v1220, %v1223
  %v1225 = vld [vmem:[%s5] sm:$0x1]
  %v1226 = vadd.f32 %v1224, 1e-05
  %v1227 = vrsqrt.pop %v1226
  %v1228 = vmul.f32 %v1225, %v1227
  %v1229 = vld [vmem:[%s6] sm:$0x1]
  %v1230 = vmul.f32 %v1150, %v1228
  %v1231 = vsub.f32 %v1229, %v1230
  %v1233 = vlaneseq
  %v1234 = vshrl.u32 %v1233, 7
  %v1235 = vsub.s32 0, %v1234
  %v1236 = vrot.slane %v1228, %v1235
  %v1238 = vmul.f32 %v1057, %v1236
  %v1239 = vmul.f32 %v1058, %v1236
  %v1240 = vmul.f32 %v1059, %v1236
  %v1241 = vmul.f32 %v1060, %v1236
  %v1243 = vlaneseq
  %v1244 = vshrl.u32 %v1243, 7
  %v1245 = vsub.s32 0, %v1244
  %v1246 = vrot.slane %v1231, %v1245
  %v1248 = vadd.f32 %v1238, %v1246
  %v1249 = vadd.f32 %v1239, %v1246
  %v1250 = vadd.f32 %v1240, %v1246
  %v1251 = vadd.f32 %v1241, %v1246
  %v1252 = vmax.f32 %v1248, 0.0
  %v1253 = vmax.f32 %v1249, 0.0
  %v1254 = vmax.f32 %v1250, 0.0
  %v1255 = vmax.f32 %v1251, 0.0
  %1256 = vst [vmem:[%s10] sm:$0xff] %v1252
  %1257 = vst [vmem:[%s10 + $0x8] sm:$0xff] %v1253
  %1258 = vst [vmem:[%s10 + $0x10] sm:$0xff] %v1254
  %1259 = vst [vmem:[%s10 + $0x18] sm:$0xff] %v1255
  // Predicated region
  $region42: #{resnet_block.1} parent=0 // pred_check
    _
  $region43: #{resnet_block.1} parent=0 // pred_check_branch
    %1261 = sbr.rel (0) target = $region45
  $region44: #{resnet_block.1} parent=0 // pred_region
    _
  $region45: #{resnet_block.1} parent=0 // pred_fallthru
    _
  // Predicated region
  $region46: #{resnet_block.1} parent=0 // pred_check
    _
  $region47: #{resnet_block.1} parent=0 // pred_check_branch
    %1263 = sbr.rel (0) target = $region49
  $region48: #{resnet_block.1} parent=0 // pred_region
    _
  $region49: #{resnet_block.1} parent=0 // pred_fallthru
    _

</llo_original>
